<compile_context>
chip_gen: v7x
topology: tpu7x:2x2x1
jax: 0.10.0
libtpu: 0.0.40
codegen_flags: <defaults>
</compile_context>

<pallas_src>
import functools

import numpy as np
import jax
import jax.numpy as jnp
from jax.experimental import pallas as pl
from jax.experimental.pallas import tpu as pltpu


def _round_up(x, m):
    return ((x + m - 1) // m) * m


# ------------------------- Pallas kernel -------------------------

def multitask_kernel(xc_ref, mask_ref, wc_ref, bc_ref, wh_ref, bh_ref,
                     out_ref, patch_ref, *, offsets, tq, n_chunks, inv_hw):
    # One grid step == one batch element.
    # xc_ref   : (C, R)            bf16  channel-major flattened padded image
    # mask_ref : (n_chunks, tq)    f32   lane-dense pool mask (1.0 on real px)
    # wc_ref   : (9*C, F_pad)      bf16  conv weight, tap-major / chan-minor
    # bc_ref   : (1, F_pad)        f32   conv bias
    # wh_ref   : (F_pad, OUT_pad)  bf16  stacked head weights [fc1|..|fc4]
    # bh_ref   : (1, OUT_pad)      f32   stacked head biases
    # out_ref  : (1, OUT_pad)      f32   lane-dense output slab
    # patch_ref: (9*C, tq)         bf16  VMEM scratch, fused-im2col patch tile
    C = xc_ref.shape[0]
    F_pad = wc_ref.shape[1]

    wc = wc_ref[...]                       # hoisted: small, reused every chunk
    bc = bc_ref[...]

    acc = jnp.zeros((1, F_pad), jnp.float32)
    # Statically unrolled chunk loop: every tap slice below has a STATIC lane
    # offset (no dynamic lane slicing) and is provably in-bounds.
    for c in range(n_chunks):
        q0 = c * tq
        # Fused im2col: pack the 9 shifted (C, tq) slices into one (9C, tq)
        # patch tile in VMEM ...
        for t, off in enumerate(offsets):
            patch_ref[t * C:(t + 1) * C, :] = \
                xc_ref[:, q0 + off:q0 + off + tq]
        # ... and contract over K = 9C in a single MXU matmul (patch^T @ wc).
        y = jax.lax.dot_general(
            patch_ref[...], wc,
            dimension_numbers=(((0,), (0,)), ((), ())),
            preferred_element_type=jnp.float32)            # (tq, F_pad) f32
        y = jnp.maximum(y + bc, 0.0)                       # bias + ReLU (f32)
        # masked global-sum-pool fused as a (1, tq) x (tq, F_pad) MXU matmul
        acc = acc + jnp.dot(mask_ref[c:c + 1, :], y,
                            preferred_element_type=jnp.float32)

    feat = (acc * inv_hw).astype(wh_ref.dtype)             # sum -> mean, bf16
    # four heads fused into one lane-dense matmul; bf16 operands, f32 accum
    out_ref[...] = (jnp.dot(feat, wh_ref[...],
                            preferred_element_type=jnp.float32) + bh_ref[...])


# ------------------------- JAX wrapper -------------------------

def multitask_forward(x, w_conv, b_conv, w_heads, b_heads, num_classes, *,
                      tq=None):
    # x: (B, C, H, W) f32 NCHW.  Returns (B, num_classes, 4) f32.
    B, C, H, W = x.shape
    F = w_conv.shape[-1]
    OUT = 4 * num_classes
    F_pad = _round_up(F, 128)
    OUT_pad = _round_up(OUT, 128)

    # tq: lane-aligned spatial chunk, bounded so the live (tq, F_pad) f32
    # activation stays ~<=128 KB (review: avoid vreg spilling).
    if tq is None:
        tq = max(128, min(1024, ((128 * 1024) // (4 * F_pad)) // 128 * 128))
    assert tq % 128 == 0

    rs = W + 2                               # padded row stride
    P = (H + 2) * rs                         # flattened padded-grid positions
    P_proc = _round_up(P, tq)
    n_chunks = P_proc // tq

    # Tap offsets on the flattened (top-padded) grid: position q of the padded
    # grid reads xbig_flat[q + (dy+1)*rs + dx - 1] for dy,dx in {0,1,2}.
    top = 3                                  # top zero rows absorb negative taps
    offsets = tuple((dy + 1) * rs + dx - 1
                    for dy in range(3) for dx in range(3))
    max_off = offsets[-1]                    # 3*rs + 1
    rows_total = -(-(P_proc + max_off) // rs)
    bot = rows_total - top - H
    assert bot >= 1
    R = rows_total * rs                      # >= P_proc + max_off (in-bounds)

    # Channel-major lane-dense image: single cast + pad + reshape (no
    # transpose / double-pad chain).
    xc = jnp.pad(x.astype(jnp.bfloat16),
                 ((0, 0), (0, 0), (top, bot), (1, 1))).reshape(B, C, R)

    # Lane-dense pool mask: 1.0 exactly on the H*W real output pixels.
    q = np.arange(P_proc)
    qi, qj = q // rs, q % rs
    mask = jnp.asarray(((qi >= 1) & (qi <= H) & (qj >= 1) & (qj <= W))
                       .astype(np.float32).reshape(n_chunks, tq))

    # Zero-pad weights to lane-dense 128-wide slabs (padded cols stay zero).
    K9 = 9 * C
    wc_p = jnp.zeros((K9, F_pad), jnp.bfloat16).at[:, :F].set(
        w_conv.reshape(K9, F).astype(jnp.bfloat16))
    bc_p = jnp.zeros((1, F_pad), jnp.float32).at[0, :F].set(b_conv)
    wh_p = jnp.zeros((F_pad, OUT_pad), jnp.bfloat16).at[:F, :OUT].set(
        w_heads.astype(jnp.bfloat16))
    bh_p = jnp.zeros((1, OUT_pad), jnp.float32).at[0, :OUT].set(b_heads)

    kernel = functools.partial(multitask_kernel, offsets=offsets, tq=tq,
                               n_chunks=n_chunks, inv_hw=1.0 / float(H * W))

    flops = (2 * B * P_proc * K9 * F_pad          # conv matmuls
             + 2 * B * P_proc * F_pad             # fused mask/pool matmuls
             + 2 * B * F_pad * OUT_pad)           # heads
    bytes_accessed = (xc.size * 2 + mask.size * 4 + wc_p.size * 2 +
                      bc_p.size * 4 + wh_p.size * 2 + bh_p.size * 4 +
                      B * OUT_pad * 4)

    out_pad = pl.pallas_call(
        kernel,
        out_shape=jax.ShapeDtypeStruct((B, 1, OUT_pad), jnp.float32),
        grid=(B,),
        in_specs=[
            pl.BlockSpec((None, C, R), lambda b: (b, 0, 0)),        # image
            pl.BlockSpec((n_chunks, tq), lambda b: (0, 0)),         # pool mask
            pl.BlockSpec((K9, F_pad), lambda b: (0, 0)),            # conv W
            pl.BlockSpec((1, F_pad), lambda b: (0, 0)),             # conv b
            pl.BlockSpec((F_pad, OUT_pad), lambda b: (0, 0)),       # heads W
            pl.BlockSpec((1, OUT_pad), lambda b: (0, 0)),           # heads b
        ],
        out_specs=pl.BlockSpec((None, 1, OUT_pad), lambda b: (b, 0, 0)),
        scratch_shapes=[pltpu.VMEM((K9, tq), jnp.bfloat16)],        # patch tile
        compiler_params=pltpu.CompilerParams(
            dimension_semantics=("parallel",),
            # safe on all generations; keep <= ~48 MB for v7x's 64 MiB VMEM
            vmem_limit_bytes=48 << 20),
        cost_estimate=pl.CostEstimate(flops=flops, transcendentals=0,
                                      bytes_accessed=bytes_accessed),
    )(xc, mask, wc_p, bc_p, wh_p, bh_p)

    out = out_pad.reshape(B, OUT_pad)[:, :OUT]
    # (B, 4*NC) -> (B, 4, NC) -> (B, NC, 4)   == torch.cat((fc1..fc4), dim=2)
    return out.reshape(B, 4, num_classes).transpose(0, 2, 1)


# ------------------------- parameter init -------------------------

def xavier_uniform(key, fan_in, fan_out, shape):
    bound = float(jnp.sqrt(6.0 / (fan_in + fan_out)))
    return jax.random.uniform(key, shape, jnp.float32, -bound, bound)


def init_params(key, in_channels, feature_size, num_classes):
    k = jax.random.split(key, 10)
    ckk = in_channels * 9
    wb = float(jnp.sqrt(1.0 / ckk))
    # synthetic conv backbone weights: (9 taps, C, F), kaiming-style uniform
    w_conv = jax.random.uniform(k[0], (9, in_channels, feature_size),
                                jnp.float32, -wb, wb)
    b_conv = jax.random.uniform(k[1], (feature_size,), jnp.float32, -wb, wb)
    hb = float(jnp.sqrt(1.0 / feature_size))
    heads_w, heads_b = [], []
    for h in range(4):
        heads_w.append(xavier_uniform(k[2 + h], feature_size, num_classes,
                                      (feature_size, num_classes)))
        heads_b.append(jax.random.uniform(k[6 + h], (num_classes,),
                                          jnp.float32, -hb, hb))
    w_heads = jnp.concatenate(heads_w, axis=1)      # (F, 4*NC)
    b_heads = jnp.concatenate(heads_b, axis=0)      # (4*NC,)
    return w_conv, b_conv, w_heads, b_heads


# ------------------------- reference (pure JAX) -------------------------

def reference_forward(x, w_conv, b_conv, w_heads, b_heads, num_classes):
    B, C, H, W = x.shape
    F = w_conv.shape[-1]
    xn = jnp.transpose(x, (0, 2, 3, 1)).astype(jnp.bfloat16)
    xp = jnp.pad(xn, ((0, 0), (1, 1), (1, 1), (0, 0)))
    cols = [xp[:, dy:dy + H, dx:dx + W, :]
            for dy in range(3) for dx in range(3)]
    patches = jnp.stack(cols, axis=3).reshape(B, H * W, 9 * C)
    wc = w_conv.astype(jnp.bfloat16).reshape(9 * C, F)
    y = jnp.einsum("bpk,kf->bpf", patches, wc,
                   preferred_element_type=jnp.float32)
    y = jnp.maximum(y + b_conv[None, None, :], 0.0)
    feat = jnp.mean(y, axis=1)
    out = jnp.einsum("bf,fo->bo", feat.astype(jnp.bfloat16),
                     w_heads.astype(jnp.bfloat16),
                     preferred_element_type=jnp.float32) + b_heads[None, :]
    return out.reshape(B, 4, num_classes).transpose(0, 2, 1)


if __name__ == "__main__":
    B, C, H, W = 2, 4, 16, 16
    feature_size, num_classes = 32, 8

    key = jax.random.PRNGKey(0)
    kx, kp = jax.random.split(key)
    x = jax.random.normal(kx, (B, C, H, W), jnp.float32)
    w_conv, b_conv, w_heads, b_heads = init_params(kp, C, feature_size,
                                                   num_classes)

    scores = multitask_forward(x, w_conv, b_conv, w_heads, b_heads,
                               num_classes)
    scores = jax.block_until_ready(scores)

    ref = reference_forward(x, w_conv, b_conv, w_heads, b_heads, num_classes)
    assert scores.shape == (B, num_classes, 4), scores.shape
    assert jnp.allclose(scores, ref, atol=1e-2, rtol=1e-2), \
        "mismatch vs reference"
    print("KERNEL_OK")
</pallas_src>

<mosaic_0001>
module attributes {stable_mosaic.version = 11 : i64} {
  func.func @multitask_kernel(%arg0: i32, %arg1: memref<1x4x576xbf16, #tpu.memory_space<vmem>>, %arg2: memref<2x256xf32, #tpu.memory_space<vmem>>, %arg3: memref<36x128xbf16, #tpu.memory_space<vmem>>, %arg4: memref<1x128xf32, #tpu.memory_space<vmem>>, %arg5: memref<128x128xbf16, #tpu.memory_space<vmem>>, %arg6: memref<1x128xf32, #tpu.memory_space<vmem>>, %arg7: memref<1x1x128xf32, #tpu.memory_space<vmem>>, %arg8: memref<36x256xbf16, #tpu.memory_space<vmem>>) attributes {dimension_semantics = [#tpu.dimension_semantics<parallel>], iteration_bounds = array<i64: 2>, scalar_prefetch = 0 : i64, scratch_operands = 1 : i64, tpu.core_type = #tpu.core_type<tc>, window_params = [{transform_indices = @transform_0, window_bounds = array<i64: 1, 4, 576>}, {pipeline_mode = #tpu.pipeline_mode<synchronous>, transform_indices = @transform_1, window_bounds = array<i64: 2, 256>}, {pipeline_mode = #tpu.pipeline_mode<synchronous>, transform_indices = @transform_2, window_bounds = array<i64: 36, 128>}, {pipeline_mode = #tpu.pipeline_mode<synchronous>, transform_indices = @transform_3, window_bounds = array<i64: 1, 128>}, {pipeline_mode = #tpu.pipeline_mode<synchronous>, transform_indices = @transform_4, window_bounds = array<i64: 128, 128>}, {pipeline_mode = #tpu.pipeline_mode<synchronous>, transform_indices = @transform_5, window_bounds = array<i64: 1, 128>}, {transform_indices = @transform_6, window_bounds = array<i64: 1, 1, 128>}]} {
    %c0 = arith.constant 0 : index
    %c0_0 = arith.constant 0 : index
    %0 = vector.load %arg3[%c0, %c0_0] : memref<36x128xbf16, #tpu.memory_space<vmem>>, vector<36x128xbf16>
    %c0_1 = arith.constant 0 : index
    %c0_2 = arith.constant 0 : index
    %1 = vector.load %arg4[%c0_1, %c0_2] : memref<1x128xf32, #tpu.memory_space<vmem>>, vector<1x128xf32>
    %cst = arith.constant 0.000000e+00 : f32
    %2 = vector.broadcast %cst : f32 to vector<1x128xf32>
    %c0_3 = arith.constant 0 : index
    %c0_4 = arith.constant 0 : index
    %c17 = arith.constant 17 : index
    %3 = vector.load %arg1[%c0_3, %c0_4, %c17] : memref<1x4x576xbf16, #tpu.memory_space<vmem>>, vector<1x4x256xbf16>
    %4 = vector.shape_cast %3 : vector<1x4x256xbf16> to vector<4x256xbf16>
    %c0_5 = arith.constant 0 : index
    %c0_6 = arith.constant 0 : index
    %5 = vector.load %arg8[%c0_5, %c0_6] : memref<36x256xbf16, #tpu.memory_space<vmem>>, vector<4x256xbf16>
    tpu.vector_store %arg8[%c0_5, %c0_6], %4 {strides = array<i32>} : memref<36x256xbf16, #tpu.memory_space<vmem>>, vector<4x256xbf16>,
    %c0_7 = arith.constant 0 : index
    %c0_8 = arith.constant 0 : index
    %c18 = arith.constant 18 : index
    %6 = vector.load %arg1[%c0_7, %c0_8, %c18] : memref<1x4x576xbf16, #tpu.memory_space<vmem>>, vector<1x4x256xbf16>
    %7 = vector.shape_cast %6 : vector<1x4x256xbf16> to vector<4x256xbf16>
    %c4 = arith.constant 4 : index
    %c0_9 = arith.constant 0 : index
    %8 = vector.load %arg8[%c4, %c0_9] : memref<36x256xbf16, #tpu.memory_space<vmem>>, vector<4x256xbf16>
    tpu.vector_store %arg8[%c4, %c0_9], %7 {strides = array<i32>} : memref<36x256xbf16, #tpu.memory_space<vmem>>, vector<4x256xbf16>,
    %c0_10 = arith.constant 0 : index
    %c0_11 = arith.constant 0 : index
    %c19 = arith.constant 19 : index
    %9 = vector.load %arg1[%c0_10, %c0_11, %c19] : memref<1x4x576xbf16, #tpu.memory_space<vmem>>, vector<1x4x256xbf16>
    %10 = vector.shape_cast %9 : vector<1x4x256xbf16> to vector<4x256xbf16>
    %c8 = arith.constant 8 : index
    %c0_12 = arith.constant 0 : index
    %11 = vector.load %arg8[%c8, %c0_12] : memref<36x256xbf16, #tpu.memory_space<vmem>>, vector<4x256xbf16>
    tpu.vector_store %arg8[%c8, %c0_12], %10 {strides = array<i32>} : memref<36x256xbf16, #tpu.memory_space<vmem>>, vector<4x256xbf16>,
    %c0_13 = arith.constant 0 : index
    %c0_14 = arith.constant 0 : index
    %c35 = arith.constant 35 : index
    %12 = vector.load %arg1[%c0_13, %c0_14, %c35] : memref<1x4x576xbf16, #tpu.memory_space<vmem>>, vector<1x4x256xbf16>
    %13 = vector.shape_cast %12 : vector<1x4x256xbf16> to vector<4x256xbf16>
    %c12 = arith.constant 12 : index
    %c0_15 = arith.constant 0 : index
    %14 = vector.load %arg8[%c12, %c0_15] : memref<36x256xbf16, #tpu.memory_space<vmem>>, vector<4x256xbf16>
    tpu.vector_store %arg8[%c12, %c0_15], %13 {strides = array<i32>} : memref<36x256xbf16, #tpu.memory_space<vmem>>, vector<4x256xbf16>,
    %c0_16 = arith.constant 0 : index
    %c0_17 = arith.constant 0 : index
    %c36 = arith.constant 36 : index
    %15 = vector.load %arg1[%c0_16, %c0_17, %c36] : memref<1x4x576xbf16, #tpu.memory_space<vmem>>, vector<1x4x256xbf16>
    %16 = vector.shape_cast %15 : vector<1x4x256xbf16> to vector<4x256xbf16>
    %c16 = arith.constant 16 : index
    %c0_18 = arith.constant 0 : index
    %17 = vector.load %arg8[%c16, %c0_18] : memref<36x256xbf16, #tpu.memory_space<vmem>>, vector<4x256xbf16>
    tpu.vector_store %arg8[%c16, %c0_18], %16 {strides = array<i32>} : memref<36x256xbf16, #tpu.memory_space<vmem>>, vector<4x256xbf16>,
    %c0_19 = arith.constant 0 : index
    %c0_20 = arith.constant 0 : index
    %c37 = arith.constant 37 : index
    %18 = vector.load %arg1[%c0_19, %c0_20, %c37] : memref<1x4x576xbf16, #tpu.memory_space<vmem>>, vector<1x4x256xbf16>
    %19 = vector.shape_cast %18 : vector<1x4x256xbf16> to vector<4x256xbf16>
    %c20 = arith.constant 20 : index
    %c0_21 = arith.constant 0 : index
    %20 = vector.load %arg8[%c20, %c0_21] : memref<36x256xbf16, #tpu.memory_space<vmem>>, vector<4x256xbf16>
    tpu.vector_store %arg8[%c20, %c0_21], %19 {strides = array<i32>} : memref<36x256xbf16, #tpu.memory_space<vmem>>, vector<4x256xbf16>,
    %c0_22 = arith.constant 0 : index
    %c0_23 = arith.constant 0 : index
    %c53 = arith.constant 53 : index
    %21 = vector.load %arg1[%c0_22, %c0_23, %c53] : memref<1x4x576xbf16, #tpu.memory_space<vmem>>, vector<1x4x256xbf16>
    %22 = vector.shape_cast %21 : vector<1x4x256xbf16> to vector<4x256xbf16>
    %c24 = arith.constant 24 : index
    %c0_24 = arith.constant 0 : index
    %23 = vector.load %arg8[%c24, %c0_24] : memref<36x256xbf16, #tpu.memory_space<vmem>>, vector<4x256xbf16>
    tpu.vector_store %arg8[%c24, %c0_24], %22 {strides = array<i32>} : memref<36x256xbf16, #tpu.memory_space<vmem>>, vector<4x256xbf16>,
    %c0_25 = arith.constant 0 : index
    %c0_26 = arith.constant 0 : index
    %c54 = arith.constant 54 : index
    %24 = vector.load %arg1[%c0_25, %c0_26, %c54] : memref<1x4x576xbf16, #tpu.memory_space<vmem>>, vector<1x4x256xbf16>
    %25 = vector.shape_cast %24 : vector<1x4x256xbf16> to vector<4x256xbf16>
    %c28 = arith.constant 28 : index
    %c0_27 = arith.constant 0 : index
    %26 = vector.load %arg8[%c28, %c0_27] : memref<36x256xbf16, #tpu.memory_space<vmem>>, vector<4x256xbf16>
    tpu.vector_store %arg8[%c28, %c0_27], %25 {strides = array<i32>} : memref<36x256xbf16, #tpu.memory_space<vmem>>, vector<4x256xbf16>,
    %c0_28 = arith.constant 0 : index
    %c0_29 = arith.constant 0 : index
    %c55 = arith.constant 55 : index
    %27 = vector.load %arg1[%c0_28, %c0_29, %c55] : memref<1x4x576xbf16, #tpu.memory_space<vmem>>, vector<1x4x256xbf16>
    %28 = vector.shape_cast %27 : vector<1x4x256xbf16> to vector<4x256xbf16>
    %c32 = arith.constant 32 : index
    %c0_30 = arith.constant 0 : index
    %29 = vector.load %arg8[%c32, %c0_30] : memref<36x256xbf16, #tpu.memory_space<vmem>>, vector<4x256xbf16>
    tpu.vector_store %arg8[%c32, %c0_30], %28 {strides = array<i32>} : memref<36x256xbf16, #tpu.memory_space<vmem>>, vector<4x256xbf16>,
    %c0_31 = arith.constant 0 : index
    %c0_32 = arith.constant 0 : index
    %30 = vector.load %arg8[%c0_31, %c0_32] : memref<36x256xbf16, #tpu.memory_space<vmem>>, vector<36x256xbf16>
    %cst_33 = arith.constant dense<0.000000e+00> : vector<256x128xf32>
    %31 = tpu.matmul %30, %0, %cst_33 {dimension_numbers = #tpu.dot_dimension_numbers<[0], [0], [1], [1], [0, 1, 1, 1], [], []>} : vector<36x256xbf16>, vector<36x128xbf16>, vector<256x128xf32> -> vector<256x128xf32>
    %32 = vector.broadcast %1 : vector<1x128xf32> to vector<256x128xf32>
    %33 = arith.addf %31, %32 : vector<256x128xf32>
    %cst_34 = arith.constant 0.000000e+00 : f32
    %34 = vector.broadcast %cst_34 : f32 to vector<256x128xf32>
    %35 = arith.maximumf %33, %34 : vector<256x128xf32>
    %c0_35 = arith.constant 0 : index
    %c0_36 = arith.constant 0 : index
    %36 = vector.load %arg2[%c0_35, %c0_36] : memref<2x256xf32, #tpu.memory_space<vmem>>, vector<1x256xf32>
    %cst_37 = arith.constant dense<0.000000e+00> : vector<1x128xf32>
    %37 = tpu.matmul %36, %35, %cst_37 {dimension_numbers = #tpu.dot_dimension_numbers<[1], [0], [0], [1], [0, 0, 1, 1], [], []>} : vector<1x256xf32>, vector<256x128xf32>, vector<1x128xf32> -> vector<1x128xf32>
    %38 = arith.addf %2, %37 : vector<1x128xf32>
    %c0_38 = arith.constant 0 : index
    %c0_39 = arith.constant 0 : index
    %c273 = arith.constant 273 : index
    %39 = vector.load %arg1[%c0_38, %c0_39, %c273] : memref<1x4x576xbf16, #tpu.memory_space<vmem>>, vector<1x4x256xbf16>
    %40 = vector.shape_cast %39 : vector<1x4x256xbf16> to vector<4x256xbf16>
    %c0_40 = arith.constant 0 : index
    %c0_41 = arith.constant 0 : index
    %41 = vector.load %arg8[%c0_40, %c0_41] : memref<36x256xbf16, #tpu.memory_space<vmem>>, vector<4x256xbf16>
    tpu.vector_store %arg8[%c0_40, %c0_41], %40 {strides = array<i32>} : memref<36x256xbf16, #tpu.memory_space<vmem>>, vector<4x256xbf16>,
    %c0_42 = arith.constant 0 : index
    %c0_43 = arith.constant 0 : index
    %c274 = arith.constant 274 : index
    %42 = vector.load %arg1[%c0_42, %c0_43, %c274] : memref<1x4x576xbf16, #tpu.memory_space<vmem>>, vector<1x4x256xbf16>
    %43 = vector.shape_cast %42 : vector<1x4x256xbf16> to vector<4x256xbf16>
    %c4_44 = arith.constant 4 : index
    %c0_45 = arith.constant 0 : index
    %44 = vector.load %arg8[%c4_44, %c0_45] : memref<36x256xbf16, #tpu.memory_space<vmem>>, vector<4x256xbf16>
    tpu.vector_store %arg8[%c4_44, %c0_45], %43 {strides = array<i32>} : memref<36x256xbf16, #tpu.memory_space<vmem>>, vector<4x256xbf16>,
    %c0_46 = arith.constant 0 : index
    %c0_47 = arith.constant 0 : index
    %c275 = arith.constant 275 : index
    %45 = vector.load %arg1[%c0_46, %c0_47, %c275] : memref<1x4x576xbf16, #tpu.memory_space<vmem>>, vector<1x4x256xbf16>
    %46 = vector.shape_cast %45 : vector<1x4x256xbf16> to vector<4x256xbf16>
    %c8_48 = arith.constant 8 : index
    %c0_49 = arith.constant 0 : index
    %47 = vector.load %arg8[%c8_48, %c0_49] : memref<36x256xbf16, #tpu.memory_space<vmem>>, vector<4x256xbf16>
    tpu.vector_store %arg8[%c8_48, %c0_49], %46 {strides = array<i32>} : memref<36x256xbf16, #tpu.memory_space<vmem>>, vector<4x256xbf16>,
    %c0_50 = arith.constant 0 : index
    %c0_51 = arith.constant 0 : index
    %c291 = arith.constant 291 : index
    %48 = vector.load %arg1[%c0_50, %c0_51, %c291] : memref<1x4x576xbf16, #tpu.memory_space<vmem>>, vector<1x4x256xbf16>
    %49 = vector.shape_cast %48 : vector<1x4x256xbf16> to vector<4x256xbf16>
    %c12_52 = arith.constant 12 : index
    %c0_53 = arith.constant 0 : index
    %50 = vector.load %arg8[%c12_52, %c0_53] : memref<36x256xbf16, #tpu.memory_space<vmem>>, vector<4x256xbf16>
    tpu.vector_store %arg8[%c12_52, %c0_53], %49 {strides = array<i32>} : memref<36x256xbf16, #tpu.memory_space<vmem>>, vector<4x256xbf16>,
    %c0_54 = arith.constant 0 : index
    %c0_55 = arith.constant 0 : index
    %c292 = arith.constant 292 : index
    %51 = vector.load %arg1[%c0_54, %c0_55, %c292] : memref<1x4x576xbf16, #tpu.memory_space<vmem>>, vector<1x4x256xbf16>
    %52 = vector.shape_cast %51 : vector<1x4x256xbf16> to vector<4x256xbf16>
    %c16_56 = arith.constant 16 : index
    %c0_57 = arith.constant 0 : index
    %53 = vector.load %arg8[%c16_56, %c0_57] : memref<36x256xbf16, #tpu.memory_space<vmem>>, vector<4x256xbf16>
    tpu.vector_store %arg8[%c16_56, %c0_57], %52 {strides = array<i32>} : memref<36x256xbf16, #tpu.memory_space<vmem>>, vector<4x256xbf16>,
    %c0_58 = arith.constant 0 : index
    %c0_59 = arith.constant 0 : index
    %c293 = arith.constant 293 : index
    %54 = vector.load %arg1[%c0_58, %c0_59, %c293] : memref<1x4x576xbf16, #tpu.memory_space<vmem>>, vector<1x4x256xbf16>
    %55 = vector.shape_cast %54 : vector<1x4x256xbf16> to vector<4x256xbf16>
    %c20_60 = arith.constant 20 : index
    %c0_61 = arith.constant 0 : index
    %56 = vector.load %arg8[%c20_60, %c0_61] : memref<36x256xbf16, #tpu.memory_space<vmem>>, vector<4x256xbf16>
    tpu.vector_store %arg8[%c20_60, %c0_61], %55 {strides = array<i32>} : memref<36x256xbf16, #tpu.memory_space<vmem>>, vector<4x256xbf16>,
    %c0_62 = arith.constant 0 : index
    %c0_63 = arith.constant 0 : index
    %c309 = arith.constant 309 : index
    %57 = vector.load %arg1[%c0_62, %c0_63, %c309] : memref<1x4x576xbf16, #tpu.memory_space<vmem>>, vector<1x4x256xbf16>
    %58 = vector.shape_cast %57 : vector<1x4x256xbf16> to vector<4x256xbf16>
    %c24_64 = arith.constant 24 : index
    %c0_65 = arith.constant 0 : index
    %59 = vector.load %arg8[%c24_64, %c0_65] : memref<36x256xbf16, #tpu.memory_space<vmem>>, vector<4x256xbf16>
    tpu.vector_store %arg8[%c24_64, %c0_65], %58 {strides = array<i32>} : memref<36x256xbf16, #tpu.memory_space<vmem>>, vector<4x256xbf16>,
    %c0_66 = arith.constant 0 : index
    %c0_67 = arith.constant 0 : index
    %c310 = arith.constant 310 : index
    %60 = vector.load %arg1[%c0_66, %c0_67, %c310] : memref<1x4x576xbf16, #tpu.memory_space<vmem>>, vector<1x4x256xbf16>
    %61 = vector.shape_cast %60 : vector<1x4x256xbf16> to vector<4x256xbf16>
    %c28_68 = arith.constant 28 : index
    %c0_69 = arith.constant 0 : index
    %62 = vector.load %arg8[%c28_68, %c0_69] : memref<36x256xbf16, #tpu.memory_space<vmem>>, vector<4x256xbf16>
    tpu.vector_store %arg8[%c28_68, %c0_69], %61 {strides = array<i32>} : memref<36x256xbf16, #tpu.memory_space<vmem>>, vector<4x256xbf16>,
    %c0_70 = arith.constant 0 : index
    %c0_71 = arith.constant 0 : index
    %c311 = arith.constant 311 : index
    %63 = vector.load %arg1[%c0_70, %c0_71, %c311] : memref<1x4x576xbf16, #tpu.memory_space<vmem>>, vector<1x4x256xbf16>
    %64 = vector.shape_cast %63 : vector<1x4x256xbf16> to vector<4x256xbf16>
    %c32_72 = arith.constant 32 : index
    %c0_73 = arith.constant 0 : index
    %65 = vector.load %arg8[%c32_72, %c0_73] : memref<36x256xbf16, #tpu.memory_space<vmem>>, vector<4x256xbf16>
    tpu.vector_store %arg8[%c32_72, %c0_73], %64 {strides = array<i32>} : memref<36x256xbf16, #tpu.memory_space<vmem>>, vector<4x256xbf16>,
    %c0_74 = arith.constant 0 : index
    %c0_75 = arith.constant 0 : index
    %66 = vector.load %arg8[%c0_74, %c0_75] : memref<36x256xbf16, #tpu.memory_space<vmem>>, vector<36x256xbf16>
    %cst_76 = arith.constant dense<0.000000e+00> : vector<256x128xf32>
    %67 = tpu.matmul %66, %0, %cst_76 {dimension_numbers = #tpu.dot_dimension_numbers<[0], [0], [1], [1], [0, 1, 1, 1], [], []>} : vector<36x256xbf16>, vector<36x128xbf16>, vector<256x128xf32> -> vector<256x128xf32>
    %68 = vector.broadcast %1 : vector<1x128xf32> to vector<256x128xf32>
    %69 = arith.addf %67, %68 : vector<256x128xf32>
    %cst_77 = arith.constant 0.000000e+00 : f32
    %70 = vector.broadcast %cst_77 : f32 to vector<256x128xf32>
    %71 = arith.maximumf %69, %70 : vector<256x128xf32>
    %c1 = arith.constant 1 : index
    %c0_78 = arith.constant 0 : index
    %72 = vector.load %arg2[%c1, %c0_78] : memref<2x256xf32, #tpu.memory_space<vmem>>, vector<1x256xf32>
    %cst_79 = arith.constant dense<0.000000e+00> : vector<1x128xf32>
    %73 = tpu.matmul %72, %71, %cst_79 {dimension_numbers = #tpu.dot_dimension_numbers<[1], [0], [0], [1], [0, 0, 1, 1], [], []>} : vector<1x256xf32>, vector<256x128xf32>, vector<1x128xf32> -> vector<1x128xf32>
    %74 = arith.addf %38, %73 : vector<1x128xf32>
    %cst_80 = arith.constant 3.906250e-03 : f32
    %75 = vector.broadcast %cst_80 : f32 to vector<1x128xf32>
    %76 = arith.mulf %74, %75 : vector<1x128xf32>
    %77 = arith.truncf %76 : vector<1x128xf32> to vector<1x128xbf16>
    %c0_81 = arith.constant 0 : index
    %c0_82 = arith.constant 0 : index
    %78 = vector.load %arg5[%c0_81, %c0_82] : memref<128x128xbf16, #tpu.memory_space<vmem>>, vector<128x128xbf16>
    %cst_83 = arith.constant dense<0.000000e+00> : vector<1x128xf32>
    %79 = tpu.matmul %77, %78, %cst_83 {dimension_numbers = #tpu.dot_dimension_numbers<[1], [0], [0], [1], [0, 0, 1, 1], [], []>} : vector<1x128xbf16>, vector<128x128xbf16>, vector<1x128xf32> -> vector<1x128xf32>
    %c0_84 = arith.constant 0 : index
    %c0_85 = arith.constant 0 : index
    %80 = vector.load %arg6[%c0_84, %c0_85] : memref<1x128xf32, #tpu.memory_space<vmem>>, vector<1x128xf32>
    %81 = arith.addf %79, %80 : vector<1x128xf32>
    %c0_86 = arith.constant 0 : index
    %c0_87 = arith.constant 0 : index
    %c0_88 = arith.constant 0 : index
    %82 = vector.load %arg7[%c0_86, %c0_87, %c0_88] : memref<1x1x128xf32, #tpu.memory_space<vmem>>, vector<1x1x128xf32>
    %83 = vector.shape_cast %82 : vector<1x1x128xf32> to vector<1x128xf32>
    %84 = vector.shape_cast %81 : vector<1x128xf32> to vector<1x1x128xf32>
    tpu.vector_store %arg7[%c0_86, %c0_87, %c0_88], %84 {strides = array<i32>} : memref<1x1x128xf32, #tpu.memory_space<vmem>>, vector<1x1x128xf32>,
    return
  }
  func.func @transform_0(%arg0: i32) -> (i32, i32, i32) {
    %c0_i32 = arith.constant 0 : i32
    %c0_i32_0 = arith.constant 0 : i32
    %c0_i32_1 = arith.constant 0 : i32
    return %arg0, %c0_i32, %c0_i32_0 : i32, i32, i32
  }
  func.func @transform_1(%arg0: i32) -> (i32, i32) {
    %c0_i32 = arith.constant 0 : i32
    %c0_i32_0 = arith.constant 0 : i32
    %c0_i32_1 = arith.constant 0 : i32
    return %c0_i32, %c0_i32_0 : i32, i32
  }
  func.func @transform_2(%arg0: i32) -> (i32, i32) {
    %c0_i32 = arith.constant 0 : i32
    %c0_i32_0 = arith.constant 0 : i32
    %c0_i32_1 = arith.constant 0 : i32
    return %c0_i32, %c0_i32_0 : i32, i32
  }
  func.func @transform_3(%arg0: i32) -> (i32, i32) {
    %c0_i32 = arith.constant 0 : i32
    %c0_i32_0 = arith.constant 0 : i32
    %c0_i32_1 = arith.constant 0 : i32
    return %c0_i32, %c0_i32_0 : i32, i32
  }
  func.func @transform_4(%arg0: i32) -> (i32, i32) {
    %c0_i32 = arith.constant 0 : i32
    %c0_i32_0 = arith.constant 0 : i32
    %c0_i32_1 = arith.constant 0 : i32
    return %c0_i32, %c0_i32_0 : i32, i32
  }
  func.func @transform_5(%arg0: i32) -> (i32, i32) {
    %c0_i32 = arith.constant 0 : i32
    %c0_i32_0 = arith.constant 0 : i32
    %c0_i32_1 = arith.constant 0 : i32
    return %c0_i32, %c0_i32_0 : i32, i32
  }
  func.func @transform_6(%arg0: i32) -> (i32, i32, i32) {
    %c0_i32 = arith.constant 0 : i32
    %c0_i32_0 = arith.constant 0 : i32
    %c0_i32_1 = arith.constant 0 : i32
    return %arg0, %c0_i32, %c0_i32_0 : i32, i32, i32
  }
}

</mosaic_0001>

<llo_original>
// kernel: tpu_custom_call.1
$region0: #{tpu_custom_call.1}
  #allocation0 [shape = 'u32[]', space=smem, size = 0x4, offset = 0x4, fixed_abs, tag = 'smem constant byte address 0x4 - core index']
  #allocation1 [shape = 'u32[144,128]{1,0:T(1,128)}', space=vmem, size = 0x12000, scoped, tag = 'internal scratch']
  #allocation2 [shape = 'bf16[36,256]{1,0:T(8,128)(2,1)}', space=vmem, size = 0x5000, scoped, tag = 'scratch operand']
  %s0 = inlined_call_operand.hbm [shape: bf16[2,4,576], index: 0, kind: input, shape index: {}]
  %s1 = inlined_call_operand.hbm [shape: f32[2,256], index: 1, kind: input, shape index: {}]
  %s2 = inlined_call_operand.hbm [shape: bf16[36,128], index: 2, kind: input, shape index: {}]
  %s3 = inlined_call_operand.vmem [shape: f32[1,128], index: 3, kind: input, shape index: {}]
  %s4 = inlined_call_operand.hbm [shape: bf16[128,128], index: 4, kind: input, shape index: {}]
  %s5 = inlined_call_operand.vmem [shape: f32[1,128], index: 5, kind: input, shape index: {}]
  %s6 = inlined_call_operand.hbm [shape: f32[2,1,128], index: 6, kind: output, shape index: {}]
  %s7 = sld [smem:[#allocation0]]
  $region73: #{tpu_custom_call.1} parent=0
    _
  %s9 = ssub.s32 1, %s7
  %s10 = scalar_select 0, %s9, %s7
  $region1: #{tpu_custom_call.1} parent=0
    #allocation3 [shape = 'u8[10240]{0}', space=vmem, size = 0x2800, scoped, tag = 'input window, operand 0']
    #allocation4 [shape = 's32[2]{0}', space=sflag, size = 0x8, scoped, tag = 'scoped memory for tpu_custom_call.1']
    #allocation5 [shape = 's32[2]{0}', space=sflag, size = 0x8, scoped, tag = 'scoped memory for tpu_custom_call.1']
    #allocation6 [shape = 'u8[2048]{0}', space=vmem, size = 0x800, scoped, tag = 'input window, operand 1, single buffered']
    #allocation7 [shape = 's32[1]{0}', space=sflag, size = 0x4, scoped, tag = 'scoped memory for tpu_custom_call.1']
    #allocation8 [shape = 'u8[10240]{0}', space=vmem, size = 0x2800, scoped, tag = 'input window, operand 2, single buffered']
    #allocation9 [shape = 'u8[32768]{0}', space=vmem, size = 0x8000, scoped, tag = 'input window, operand 4, single buffered']
    #allocation10 [shape = 's32[1]{0}', space=sflag, size = 0x4, scoped, tag = 'scoped memory for tpu_custom_call.1']
    #allocation11 [shape = 'u8[1024]{0}', space=vmem, size = 0x400, scoped, tag = 'output window, operand 0']
    %11 = vsyncpa [#allocation4], 0
    %s12 = scalar_lea.sflag [#allocation4], 1
    %13 = vsyncpa %s12, 0
    %14 = vsyncpa [#allocation7], 0
    %15 = vsyncpa [#allocation10], 0
    %16 = vsyncpa [#allocation5], 0
    %s17 = scalar_lea.sflag [#allocation5], 1
    %18 = vsyncpa %s17, 0
    loop: start=0, step=1, limit=4
    $region2: #{tpu_custom_call.1} parent=1 // loop_pre_header
      _
    $region3: #{tpu_custom_call.1} parent=1 // loop_header
      %s20 = sphi 0, %s24
      %p21 = scmp.ge.s32.totalorder %s20, 4
      %s30 = sphi 0, %s32
      %s33 = sphi 0, %s30
      %s34 = sphi 0, %s33
      %s50 = sphi 0, %s34
      %s54 = sphi 0, %s54
      %s56 = sphi 0, %s54
      %s57 = sphi 0, %s56
      %s71 = sphi 0, %s57
      %s75 = sphi 0, %s75
      %s77 = sphi 0, %s75
      %s78 = sphi 0, %s77
      %s92 = sphi 0, %s78
      %s96 = sphi 0, %s96
      %s98 = sphi 0, %s96
      %s99 = sphi 0, %s98
      %s113 = sphi 0, %s99
      %s117 = sphi 0, %s117
      %s119 = sphi 0, %s117
      %s120 = sphi 0, %s119
      %s134 = sphi 0, %s120
      %s138 = sphi 0, %s138
      %s140 = sphi 0, %s138
      %s141 = sphi 0, %s140
      %s155 = sphi 0, %s141
      %s161 = sphi 0, %s163
      %s164 = sphi 0, %s161
      %s165 = sphi 0, %s164
      %s181 = sphi 0, %s165
    $region4: #{tpu_custom_call.1} parent=1 // loop_header_branch
      %23 = sbr.rel (%p21) target = $region8
    $region5: #{tpu_custom_call.1} parent=1 // loop_body
      %s25 = ssub.s32 %s20, 1
      %s26 = ssub.s32 %s20, 2
      %s27 = sadd.s32 %s20, 1
      %s28 = ssub.s32 %s20, %s27
      %p29 = scmp.eq.s32.totalorder %s28, 0
      %s31 = sadd.s32 %s30, 1
      %s32 = scalar_select %p29, %s30, %s31
      %p35 = pneg %p29
      %p36 = scmp.eq.s32.totalorder %s20, 1
      %p37 = por %p35, %p36
      %p38 = scmp.ne.s32.totalorder %s30, %s33
      %p39 = scmp.eq.s32.totalorder %s20, 0
      %p40 = por %p38, %p39
      %p41 = scmp.ne.s32.totalorder %s30, %s33
      %p42 = scmp.eq.s32.totalorder %s25, 1
      %p43 = por %p41, %p42
      %p44 = scmp.ne.s32.totalorder %s33, %s34
      %p45 = scmp.eq.s32.totalorder %s25, 0
      %p46 = por %p44, %p45
      %p47 = scmp.ne.s32.totalorder %s33, %s34
      %p48 = scmp.eq.s32.totalorder %s26, 1
      %p49 = por %p47, %p48
      %p51 = scmp.ne.s32.totalorder %s34, %s50
      %p52 = scmp.eq.s32.totalorder %s26, 0
      %p53 = por %p51, %p52
      %s55 = sadd.s32 %s54, 1
      %p58 = scmp.eq.s32.totalorder %s20, 1
      %p59 = scmp.ne.s32.totalorder %s54, %s56
      %p60 = scmp.eq.s32.totalorder %s20, 0
      %p61 = por %p59, %p60
      %p62 = scmp.ne.s32.totalorder %s54, %s56
      %p63 = scmp.eq.s32.totalorder %s25, 1
      %p64 = por %p62, %p63
      %p65 = scmp.ne.s32.totalorder %s56, %s57
      %p66 = scmp.eq.s32.totalorder %s25, 0
      %p67 = por %p65, %p66
      %p68 = scmp.ne.s32.totalorder %s56, %s57
      %p69 = scmp.eq.s32.totalorder %s26, 1
      %p70 = por %p68, %p69
      %p72 = scmp.ne.s32.totalorder %s57, %s71
      %p73 = scmp.eq.s32.totalorder %s26, 0
      %p74 = por %p72, %p73
      %s76 = sadd.s32 %s75, 1
      %p79 = scmp.eq.s32.totalorder %s20, 1
      %p80 = scmp.ne.s32.totalorder %s75, %s77
      %p81 = scmp.eq.s32.totalorder %s20, 0
      %p82 = por %p80, %p81
      %p83 = scmp.ne.s32.totalorder %s75, %s77
      %p84 = scmp.eq.s32.totalorder %s25, 1
      %p85 = por %p83, %p84
      %p86 = scmp.ne.s32.totalorder %s77, %s78
      %p87 = scmp.eq.s32.totalorder %s25, 0
      %p88 = por %p86, %p87
      %p89 = scmp.ne.s32.totalorder %s77, %s78
      %p90 = scmp.eq.s32.totalorder %s26, 1
      %p91 = por %p89, %p90
      %p93 = scmp.ne.s32.totalorder %s78, %s92
      %p94 = scmp.eq.s32.totalorder %s26, 0
      %p95 = por %p93, %p94
      %s97 = sadd.s32 %s96, 1
      %p100 = scmp.eq.s32.totalorder %s20, 1
      %p101 = scmp.ne.s32.totalorder %s96, %s98
      %p102 = scmp.eq.s32.totalorder %s20, 0
      %p103 = por %p101, %p102
      %p104 = scmp.ne.s32.totalorder %s96, %s98
      %p105 = scmp.eq.s32.totalorder %s25, 1
      %p106 = por %p104, %p105
      %p107 = scmp.ne.s32.totalorder %s98, %s99
      %p108 = scmp.eq.s32.totalorder %s25, 0
      %p109 = por %p107, %p108
      %p110 = scmp.ne.s32.totalorder %s98, %s99
      %p111 = scmp.eq.s32.totalorder %s26, 1
      %p112 = por %p110, %p111
      %p114 = scmp.ne.s32.totalorder %s99, %s113
      %p115 = scmp.eq.s32.totalorder %s26, 0
      %p116 = por %p114, %p115
      %s118 = sadd.s32 %s117, 1
      %p121 = scmp.eq.s32.totalorder %s20, 1
      %p122 = scmp.ne.s32.totalorder %s117, %s119
      %p123 = scmp.eq.s32.totalorder %s20, 0
      %p124 = por %p122, %p123
      %p125 = scmp.ne.s32.totalorder %s117, %s119
      %p126 = scmp.eq.s32.totalorder %s25, 1
      %p127 = por %p125, %p126
      %p128 = scmp.ne.s32.totalorder %s119, %s120
      %p129 = scmp.eq.s32.totalorder %s25, 0
      %p130 = por %p128, %p129
      %p131 = scmp.ne.s32.totalorder %s119, %s120
      %p132 = scmp.eq.s32.totalorder %s26, 1
      %p133 = por %p131, %p132
      %p135 = scmp.ne.s32.totalorder %s120, %s134
      %p136 = scmp.eq.s32.totalorder %s26, 0
      %p137 = por %p135, %p136
      %s139 = sadd.s32 %s138, 1
      %p142 = scmp.eq.s32.totalorder %s20, 1
      %p143 = scmp.ne.s32.totalorder %s138, %s140
      %p144 = scmp.eq.s32.totalorder %s20, 0
      %p145 = por %p143, %p144
      %p146 = scmp.ne.s32.totalorder %s138, %s140
      %p147 = scmp.eq.s32.totalorder %s25, 1
      %p148 = por %p146, %p147
      %p149 = scmp.ne.s32.totalorder %s140, %s141
      %p150 = scmp.eq.s32.totalorder %s25, 0
      %p151 = por %p149, %p150
      %p152 = scmp.ne.s32.totalorder %s140, %s141
      %p153 = scmp.eq.s32.totalorder %s26, 1
      %p154 = por %p152, %p153
      %p156 = scmp.ne.s32.totalorder %s141, %s155
      %p157 = scmp.eq.s32.totalorder %s26, 0
      %p158 = por %p156, %p157
      %s159 = ssub.s32 %s20, %s27
      %p160 = scmp.eq.s32.totalorder %s159, 0
      %s162 = sadd.s32 %s161, 1
      %s163 = scalar_select %p160, %s161, %s162
      %p166 = pneg %p160
      %p167 = scmp.eq.s32.totalorder %s20, 1
      %p168 = por %p166, %p167
      %p169 = scmp.ne.s32.totalorder %s161, %s164
      %p170 = scmp.eq.s32.totalorder %s20, 0
      %p171 = por %p169, %p170
      %p172 = scmp.ne.s32.totalorder %s161, %s164
      %p173 = scmp.eq.s32.totalorder %s25, 1
      %p174 = por %p172, %p173
      %p175 = scmp.ne.s32.totalorder %s164, %s165
      %p176 = scmp.eq.s32.totalorder %s25, 0
      %p177 = por %p175, %p176
      %p178 = scmp.ne.s32.totalorder %s164, %s165
      %p179 = scmp.eq.s32.totalorder %s26, 1
      %p180 = por %p178, %p179
      %p182 = scmp.ne.s32.totalorder %s165, %s181
      %p183 = scmp.eq.s32.totalorder %s26, 0
      %p184 = por %p182, %p183
      %p185 = scmp.le.s32.totalorder 1, %s20
      %p186 = scmp.lt.s32.totalorder %s20, 3
      %p187 = pnand %p185, %p186
      %p188 = pneg %p187
      // Predicated region
      $region9: #{tpu_custom_call.1} parent=5 // pred_check
        _
      $region10: #{tpu_custom_call.1} parent=5 // pred_check_branch
        %190 = sbr.rel (%p187) target = $region12
      $region11: #{tpu_custom_call.1} parent=5 // pred_region
        %s191 = ssub.s32 %s20, 1
        // Predicated region
        $region13: #{tpu_custom_call.1} parent=11 // pred_check
          %p192 = pneg %p67
        $region14: #{tpu_custom_call.1} parent=11 // pred_check_branch
          %194 = sbr.rel (%p192) target = $region16
        $region15: #{tpu_custom_call.1} parent=11 // pred_region
          %s196 = ssub.s32 64, 64
          %197 = vsyncadd [#allocation7], %s196
          %s199 = sshll.u32 [#allocation6], 4
          %s200 = int_to_ptr.vmem [resolvable:$true] %s199
          %202 = dma.hbm_to_vmem [thread:$0]  %s1, 64, %s200, [#allocation7]
        $region16: #{tpu_custom_call.1} parent=11 // pred_fallthru
          _
        // Predicated region
        $region17: #{tpu_custom_call.1} parent=11 // pred_check
          %p203 = pneg %p88
        $region18: #{tpu_custom_call.1} parent=11 // pred_check_branch
          %205 = sbr.rel (%p203) target = $region20
        $region19: #{tpu_custom_call.1} parent=11 // pred_region
          %s207 = ssub.s32 320, 320
          %208 = vsyncadd [#allocation7], %s207
          %s209 = sshll.u32 [#allocation8], 4
          %s210 = int_to_ptr.vmem [resolvable:$true] %s209
          %215 = dma.hbm_to_vmem [thread:$0]  %s2, 320, %s210, [#allocation7], 64, 64, 4
        $region20: #{tpu_custom_call.1} parent=11 // pred_fallthru
          _
        // Predicated region
        $region21: #{tpu_custom_call.1} parent=11 // pred_check
          %p216 = pneg %p109
        $region22: #{tpu_custom_call.1} parent=11 // pred_check_branch
          %218 = sbr.rel (%p216) target = $region24
        $region23: #{tpu_custom_call.1} parent=11 // pred_region
          _
        $region24: #{tpu_custom_call.1} parent=11 // pred_fallthru
          _
        // Predicated region
        $region25: #{tpu_custom_call.1} parent=11 // pred_check
          %p219 = pneg %p130
        $region26: #{tpu_custom_call.1} parent=11 // pred_check_branch
          %221 = sbr.rel (%p219) target = $region28
        $region27: #{tpu_custom_call.1} parent=11 // pred_region
          %s223 = ssub.s32 1024, 1024
          %224 = vsyncadd [#allocation10], %s223
          %s225 = sshll.u32 [#allocation9], 4
          %s226 = int_to_ptr.vmem [resolvable:$true] %s225
          %231 = dma.hbm_to_vmem [thread:$0]  %s4, 1024, %s226, [#allocation10], 64, 64, 4
        $region28: #{tpu_custom_call.1} parent=11 // pred_fallthru
          _
        // Predicated region
        $region29: #{tpu_custom_call.1} parent=11 // pred_check
          %p232 = pneg %p151
        $region30: #{tpu_custom_call.1} parent=11 // pred_check_branch
          %234 = sbr.rel (%p232) target = $region32
        $region31: #{tpu_custom_call.1} parent=11 // pred_region
          _
        $region32: #{tpu_custom_call.1} parent=11 // pred_fallthru
          _
      $region12: #{tpu_custom_call.1} parent=5 // pred_fallthru
        _
      %p235 = scmp.lt.s32.totalorder %s20, 2
      // Predicated region
      $region33: #{tpu_custom_call.1} parent=5 // pred_check
        %p236 = pneg %p235
      $region34: #{tpu_custom_call.1} parent=5 // pred_check_branch
        %238 = sbr.rel (%p236) target = $region36
      $region35: #{tpu_custom_call.1} parent=5 // pred_region
        // Predicated region
        $region37: #{tpu_custom_call.1} parent=35 // pred_check
          %p239 = pneg %p40
        $region38: #{tpu_custom_call.1} parent=35 // pred_check_branch
          %241 = sbr.rel (%p239) target = $region40
        $region39: #{tpu_custom_call.1} parent=35 // pred_region
          %s242 = sand.u32 %s30, 1
          %s243 = scalar_lea.sflag [#allocation4], %s242
          %s244 = sand.u32 %s30, 1
          %s245 = smul.addr %s244, 10
          %s246 = scalar_lea.vmem [#allocation3], %s245
          %s248 = ssub.s32 160, 160
          %249 = vsyncadd %s243, %s248
          %s250 = smul.addr %s20, 5
          %s251 = smul.addr %s250, 32
          %s252 = scalar_lea.hbm %s0, %s251
          %s254 = sshll.u32 %s246, 4
          %s255 = int_to_ptr.vmem [resolvable:$true] %s254
          %257 = dma.hbm_to_vmem [thread:$0]  %s252, 160, %s255, %s243
        $region40: #{tpu_custom_call.1} parent=35 // pred_fallthru
          _
      $region36: #{tpu_custom_call.1} parent=5 // pred_fallthru
        _
      %p258 = scmp.le.s32.totalorder 1, %s20
      %p259 = scmp.lt.s32.totalorder %s20, 3
      %p260 = pnand %p258, %p259
      %p261 = pneg %p260
      // Predicated region
      $region41: #{tpu_custom_call.1} parent=5 // pred_check
        _
      $region42: #{tpu_custom_call.1} parent=5 // pred_check_branch
        %263 = sbr.rel (%p260) target = $region44
      $region43: #{tpu_custom_call.1} parent=5 // pred_region
        %s264 = ssub.s32 %s20, 1
        %s265 = sand.u32 %s33, 1
        %s266 = scalar_lea.sflag [#allocation4], %s265
        %s267 = sand.u32 %s33, 1
        %s268 = smul.addr %s267, 10
        %s269 = scalar_lea.vmem [#allocation3], %s268
        // Predicated region
        $region45: #{tpu_custom_call.1} parent=43 // pred_check
          %p270 = pneg %p46
        $region46: #{tpu_custom_call.1} parent=43 // pred_check_branch
          %272 = sbr.rel (%p270) target = $region48
        $region47: #{tpu_custom_call.1} parent=43 // pred_region
          %273 = dma.done %s266, 160
        $region48: #{tpu_custom_call.1} parent=43 // pred_fallthru
          _
        // Predicated region
        $region49: #{tpu_custom_call.1} parent=43 // pred_check
          %p274 = pneg %p67
        $region50: #{tpu_custom_call.1} parent=43 // pred_check_branch
          %276 = sbr.rel (%p274) target = $region52
        $region51: #{tpu_custom_call.1} parent=43 // pred_region
          %277 = dma.done [#allocation7], 64
        $region52: #{tpu_custom_call.1} parent=43 // pred_fallthru
          _
        // Predicated region
        $region53: #{tpu_custom_call.1} parent=43 // pred_check
          %p278 = pneg %p88
        $region54: #{tpu_custom_call.1} parent=43 // pred_check_branch
          %280 = sbr.rel (%p278) target = $region56
        $region55: #{tpu_custom_call.1} parent=43 // pred_region
          %281 = dma.done [#allocation7], 320
        $region56: #{tpu_custom_call.1} parent=43 // pred_fallthru
          _
        // Predicated region
        $region57: #{tpu_custom_call.1} parent=43 // pred_check
          %p282 = pneg %p130
        $region58: #{tpu_custom_call.1} parent=43 // pred_check_branch
          %284 = sbr.rel (%p282) target = $region60
        $region59: #{tpu_custom_call.1} parent=43 // pred_region
          %285 = dma.done [#allocation10], 1024
        $region60: #{tpu_custom_call.1} parent=43 // pred_fallthru
          _
        %s286 = sand.u32 %s33, 1
        %s287 = scalar_lea.sflag [#allocation4], %s286
        %s288 = sand.u32 %s33, 1
        %s289 = smul.addr %s288, 10
        %s290 = scalar_lea.vmem [#allocation3], %s289
        %p291 = pneg %p46
        %p292 = pneg %p43
        %p293 = pneg %p67
        %p294 = pneg %p64
        %p295 = pneg %p88
        %p296 = pneg %p85
        %p297 = pneg %p109
        %p298 = pneg %p106
        %p299 = pneg %p130
        %p300 = pneg %p127
        %p301 = pneg %p151
        %p302 = pneg %p148
        %p303 = pneg %p177
        %p304 = pneg %p174
        %s305 = sand.u32 %s164, 1
        %s306 = scalar_lea.sflag [#allocation5], %s305
        %s307 = sand.u32 %s164, 1
        %s308 = scalar_lea.vmem [#allocation11], %s307
        %v310 = vld [vmem:[#allocation8] sm:$0xf]
        %v311 = vld [vmem:[#allocation8 + $0x4] sm:$0xf]
        %v312 = vld [vmem:[#allocation8 + $0x8] sm:$0xf]
        %v313 = vld [vmem:[#allocation8 + $0xc] sm:$0xf]
        %v314 = vld [vmem:[#allocation8 + $0x10] sm:$0x3]
        %v315 = vld [vmem:[%s3] sm:$0x1]
        %v316 = vld [vmem:[%s269] sm:$0x3f]
        %v318 = vcombine.high %v316, %v316
        %v320 = vunpack.c.l.s4 1983009808
        %v321 = vunpack.c.0.s8 %v320
        %v322 = vlaneseq
        %v323 = vshrl.u32 %v322, 7
        %v324 = vsub.s32 %v321, %v323
        %v325 = vrot.slane %v316, %v324
        %v327 = vunpack.c.l.s4 1983009808
        %v328 = vunpack.c.0.s8 %v327
        %v329 = vlaneseq
        %v330 = vshrl.u32 %v329, 7
        %v331 = vsub.s32 %v328, %v330
        %v332 = vrot.slane %v318, %v331
        %333 = vrot.lane.b32.xlu0 %v325, 111
        %v334 = vpop.permute.xlu0 %333
        %335 = vrot.lane.b32.xlu0 %v332, 111
        %v336 = vpop.permute.xlu0 %335
        %v337 = vrot.slane %v334, 4
        %v338 = vrot.slane %v336, 4
        %vm339 = vcmask 1043456
        %v340 = vsel %vm339, %v337, %v338
        %vm341 = vcmask 908288
        %v342 = vsel %vm341, %v334, %v340
        %344 = vst [vmem:[#allocation2] sm:$0x33] %v342
        %v345 = vld [vmem:[%s269] sm:$0x3f]
        %v347 = vcombine.low %v345, %v345
        %v349 = vunpack.c.l.s4 1983009808
        %v350 = vunpack.c.0.s8 %v349
        %v351 = vlaneseq
        %v352 = vshrl.u32 %v351, 7
        %v353 = vsub.s32 %v350, %v352
        %v354 = vrot.slane %v347, %v353
        %v356 = vunpack.c.l.s4 1983009808
        %v357 = vunpack.c.0.s8 %v356
        %v358 = vlaneseq
        %v359 = vshrl.u32 %v358, 7
        %v360 = vsub.s32 %v357, %v359
        %v361 = vrot.slane %v345, %v360
        %362 = vrot.lane.b32.xlu0 %v354, 110
        %v363 = vpop.permute.xlu0 %362
        %364 = vrot.lane.b32.xlu0 %v361, 110
        %v365 = vpop.permute.xlu0 %364
        %v366 = vrot.slane %v363, 4
        %v367 = vrot.slane %v365, 4
        %v368 = vsel %vm339, %v366, %v367
        %vm369 = vcmask 900096
        %v370 = vsel %vm369, %v363, %v368
        %372 = vst [vmem:[#allocation2] sm:$0xcc] %v370
        %v373 = vld [vmem:[%s269] sm:$0x3f]
        %v375 = vcombine.high %v373, %v373
        %v377 = vunpack.c.l.s4 1983009808
        %v378 = vunpack.c.0.s8 %v377
        %v379 = vlaneseq
        %v380 = vshrl.u32 %v379, 7
        %v381 = vsub.s32 %v378, %v380
        %v382 = vrot.slane %v373, %v381
        %v384 = vunpack.c.l.s4 1983009808
        %v385 = vunpack.c.0.s8 %v384
        %v386 = vlaneseq
        %v387 = vshrl.u32 %v386, 7
        %v388 = vsub.s32 %v385, %v387
        %v389 = vrot.slane %v375, %v388
        %390 = vrot.lane.b32.xlu0 %v382, 109
        %v391 = vpop.permute.xlu0 %390
        %392 = vrot.lane.b32.xlu0 %v389, 109
        %v393 = vpop.permute.xlu0 %392
        %v394 = vrot.slane %v391, 4
        %v395 = vrot.slane %v393, 4
        %v396 = vsel %vm339, %v394, %v395
        %vm397 = vcmask 891904
        %v398 = vsel %vm397, %v391, %v396
        %400 = vst [vmem:[#allocation2 + $0x8] sm:$0x33] %v398
        %v401 = vld [vmem:[%s269] sm:$0x3f]
        %v403 = vcombine.low %v401, %v401
        %v405 = vunpack.c.l.s4 1983009808
        %v406 = vunpack.c.0.s8 %v405
        %v407 = vlaneseq
        %v408 = vshrl.u32 %v407, 7
        %v409 = vsub.s32 %v406, %v408
        %v410 = vrot.slane %v403, %v409
        %v412 = vunpack.c.l.s4 1983009808
        %v413 = vunpack.c.0.s8 %v412
        %v414 = vlaneseq
        %v415 = vshrl.u32 %v414, 7
        %v416 = vsub.s32 %v413, %v415
        %v417 = vrot.slane %v401, %v416
        %418 = vrot.lane.b32.xlu0 %v410, 93
        %v419 = vpop.permute.xlu0 %418
        %420 = vrot.lane.b32.xlu0 %v417, 93
        %v421 = vpop.permute.xlu0 %420
        %v422 = vrot.slane %v419, 4
        %v423 = vrot.slane %v421, 4
        %v424 = vsel %vm339, %v422, %v423
        %vm425 = vcmask 760832
        %v426 = vsel %vm425, %v419, %v424
        %428 = vst [vmem:[#allocation2 + $0x8] sm:$0xcc] %v426
        %v429 = vld [vmem:[%s269] sm:$0x3f]
        %v431 = vcombine.high %v429, %v429
        %v433 = vunpack.c.l.s4 1983009808
        %v434 = vunpack.c.0.s8 %v433
        %v435 = vlaneseq
        %v436 = vshrl.u32 %v435, 7
        %v437 = vsub.s32 %v434, %v436
        %v438 = vrot.slane %v429, %v437
        %v440 = vunpack.c.l.s4 1983009808
        %v441 = vunpack.c.0.s8 %v440
        %v442 = vlaneseq
        %v443 = vshrl.u32 %v442, 7
        %v444 = vsub.s32 %v441, %v443
        %v445 = vrot.slane %v431, %v444
        %446 = vrot.lane.b32.xlu0 %v438, 92
        %v447 = vpop.permute.xlu0 %446
        %448 = vrot.lane.b32.xlu0 %v445, 92
        %v449 = vpop.permute.xlu0 %448
        %v450 = vrot.slane %v447, 4
        %v451 = vrot.slane %v449, 4
        %v452 = vsel %vm339, %v450, %v451
        %vm453 = vcmask 752640
        %v454 = vsel %vm453, %v447, %v452
        %456 = vst [vmem:[#allocation2 + $0x10] sm:$0x33] %v454
        %v457 = vld [vmem:[%s269] sm:$0x3f]
        %v459 = vcombine.low %v457, %v457
        %v461 = vunpack.c.l.s4 1983009808
        %v462 = vunpack.c.0.s8 %v461
        %v463 = vlaneseq
        %v464 = vshrl.u32 %v463, 7
        %v465 = vsub.s32 %v462, %v464
        %v466 = vrot.slane %v459, %v465
        %v468 = vunpack.c.l.s4 1983009808
        %v469 = vunpack.c.0.s8 %v468
        %v470 = vlaneseq
        %v471 = vshrl.u32 %v470, 7
        %v472 = vsub.s32 %v469, %v471
        %v473 = vrot.slane %v457, %v472
        %474 = vrot.lane.b32.xlu0 %v466, 91
        %v475 = vpop.permute.xlu0 %474
        %476 = vrot.lane.b32.xlu0 %v473, 91
        %v477 = vpop.permute.xlu0 %476
        %v478 = vrot.slane %v475, 4
        %v479 = vrot.slane %v477, 4
        %v480 = vsel %vm339, %v478, %v479
        %vm481 = vcmask 744448
        %v482 = vsel %vm481, %v475, %v480
        %484 = vst [vmem:[#allocation2 + $0x10] sm:$0xcc] %v482
        %v485 = vld [vmem:[%s269] sm:$0x3f]
        %v487 = vcombine.high %v485, %v485
        %v489 = vunpack.c.l.s4 1983009808
        %v490 = vunpack.c.0.s8 %v489
        %v491 = vlaneseq
        %v492 = vshrl.u32 %v491, 7
        %v493 = vsub.s32 %v490, %v492
        %v494 = vrot.slane %v485, %v493
        %v496 = vunpack.c.l.s4 1983009808
        %v497 = vunpack.c.0.s8 %v496
        %v498 = vlaneseq
        %v499 = vshrl.u32 %v498, 7
        %v500 = vsub.s32 %v497, %v499
        %v501 = vrot.slane %v487, %v500
        %502 = vrot.lane.b32.xlu0 %v494, 75
        %v503 = vpop.permute.xlu0 %502
        %504 = vrot.lane.b32.xlu0 %v501, 75
        %v505 = vpop.permute.xlu0 %504
        %v506 = vrot.slane %v503, 4
        %v507 = vrot.slane %v505, 4
        %v508 = vsel %vm339, %v506, %v507
        %vm509 = vcmask 613376
        %v510 = vsel %vm509, %v503, %v508
        %512 = vst [vmem:[#allocation2 + $0x18] sm:$0x33] %v510
        %v513 = vld [vmem:[%s269] sm:$0x3f]
        %v515 = vcombine.low %v513, %v513
        %v517 = vunpack.c.l.s4 1983009808
        %v518 = vunpack.c.0.s8 %v517
        %v519 = vlaneseq
        %v520 = vshrl.u32 %v519, 7
        %v521 = vsub.s32 %v518, %v520
        %v522 = vrot.slane %v515, %v521
        %v524 = vunpack.c.l.s4 1983009808
        %v525 = vunpack.c.0.s8 %v524
        %v526 = vlaneseq
        %v527 = vshrl.u32 %v526, 7
        %v528 = vsub.s32 %v525, %v527
        %v529 = vrot.slane %v513, %v528
        %530 = vrot.lane.b32.xlu0 %v522, 74
        %v531 = vpop.permute.xlu0 %530
        %532 = vrot.lane.b32.xlu0 %v529, 74
        %v533 = vpop.permute.xlu0 %532
        %v534 = vrot.slane %v531, 4
        %v535 = vrot.slane %v533, 4
        %v536 = vsel %vm339, %v534, %v535
        %vm537 = vcmask 605184
        %v538 = vsel %vm537, %v531, %v536
        %540 = vst [vmem:[#allocation2 + $0x18] sm:$0xcc] %v538
        %v541 = vld [vmem:[%s269] sm:$0x3f]
        %v543 = vcombine.high %v541, %v541
        %v545 = vunpack.c.l.s4 1983009808
        %v546 = vunpack.c.0.s8 %v545
        %v547 = vlaneseq
        %v548 = vshrl.u32 %v547, 7
        %v549 = vsub.s32 %v546, %v548
        %v550 = vrot.slane %v541, %v549
        %v552 = vunpack.c.l.s4 1983009808
        %v553 = vunpack.c.0.s8 %v552
        %v554 = vlaneseq
        %v555 = vshrl.u32 %v554, 7
        %v556 = vsub.s32 %v553, %v555
        %v557 = vrot.slane %v543, %v556
        %558 = vrot.lane.b32.xlu0 %v550, 73
        %v559 = vpop.permute.xlu0 %558
        %560 = vrot.lane.b32.xlu0 %v557, 73
        %v561 = vpop.permute.xlu0 %560
        %v562 = vrot.slane %v559, 4
        %v563 = vrot.slane %v561, 4
        %v564 = vsel %vm339, %v562, %v563
        %vm565 = vcmask 596992
        %v566 = vsel %vm565, %v559, %v564
        %568 = vst [vmem:[#allocation2 + $0x20] sm:$0x33] %v566
        %v569 = vld [vmem:[#allocation2] sm:$0xff]
        %v570 = vld [vmem:[#allocation2 + $0x8] sm:$0xff]
        %v571 = vld [vmem:[#allocation2 + $0x10] sm:$0xff]
        %v572 = vld [vmem:[#allocation2 + $0x18] sm:$0xff]
        %v573 = vld [vmem:[#allocation2 + $0x20] sm:$0x33]
        %v575 = vlaneseq
        %v576 = vshrl.u32 %v575, 7
        %v577 = vsub.s32 0, %v576
        %v578 = vrot.slane %v315, %v577
        %v585 = vunpack.c.l.b16 %v569
        %v586 = vunpack.c.h.b16 %v569
        %v587 = vunpack.c.l.b16 %v570
        %v588 = vunpack.c.h.b16 %v570
        %v589 = vunpack.c.l.b16 %v571
        %v590 = vunpack.c.h.b16 %v571
        %v591 = vunpack.c.l.b16 %v572
        %v592 = vunpack.c.h.b16 %v572
        %v593 = vunpack.c.l.b16 %v573
        %v594 = vunpack.c.h.b16 %v573
        %v595 = vpack.c.b16 %v587, %v585
        %v596 = vpack.c.b16 %v588, %v586
        %v597 = vpack.c.b16 %v591, %v589
        %v598 = vpack.c.b16 %v592, %v590
        %v599 = vpack.c.b16 %v593, %v593
        %v600 = vpack.c.b16 %v594, %v594
        %607 = vxpose.xlu0.c.b16.start [1/8] %v595, 128
        %608 = vxpose.xlu0.c.b16.cont [2/8] %v597, 128
        %609 = vxpose.xlu0.c.b16.cont [3/8] %v599, 128
        %610 = vxpose.xlu0.c.b16.cont [4/8] 0, 128
        %611 = vxpose.xlu0.c.b16.cont [5/8] 0, 128
        %612 = vxpose.xlu0.c.b16.cont [6/8] 0, 128
        %613 = vxpose.xlu0.c.b16.cont [7/8] 0, 128
        %614 = vxpose.xlu0.c.b16.end [8/8] 0, 128
        %v615 = vpop.trf.xlu0
        %v616 = vpop.trf.xlu0
        %v617 = vpop.trf.xlu0
        %v618 = vpop.trf.xlu0
        %v619 = vpop.trf.xlu0
        %v620 = vpop.trf.xlu0
        %v621 = vpop.trf.xlu0
        %v622 = vpop.trf.xlu0
        %623 = vxpose.xlu0.c.b16.start [1/8] %v596, 128
        %624 = vxpose.xlu0.c.b16.cont [2/8] %v598, 128
        %625 = vxpose.xlu0.c.b16.cont [3/8] %v600, 128
        %626 = vxpose.xlu0.c.b16.cont [4/8] 0, 128
        %627 = vxpose.xlu0.c.b16.cont [5/8] 0, 128
        %628 = vxpose.xlu0.c.b16.cont [6/8] 0, 128
        %629 = vxpose.xlu0.c.b16.cont [7/8] 0, 128
        %630 = vxpose.xlu0.c.b16.end [8/8] 0, 128
        %v631 = vpop.trf.xlu0
        %v632 = vpop.trf.xlu0
        %v633 = vpop.trf.xlu0
        %v634 = vpop.trf.xlu0
        %v635 = vpop.trf.xlu0
        %v636 = vpop.trf.xlu0
        %v637 = vpop.trf.xlu0
        %v638 = vpop.trf.xlu0
        %v644 = vunpack.c.l.b16 %v310
        %v645 = vunpack.c.l.b16 %v311
        %v646 = vunpack.c.l.b16 %v312
        %v647 = vunpack.c.l.b16 %v313
        %v648 = vunpack.c.l.b16 %v314
        %v649 = vpack.c.b16 %v645, %v644
        %v650 = vpack.c.b16 %v647, %v646
        %v651 = vpack.c.b16 %v648, %v648
        %vm654 = vcmask 293888
        %v656 = vsel %vm654, %v615, 0
        %v659 = vsel %vm654, %v616, 0
        %v662 = vsel %vm654, %v617, 0
        %v665 = vsel %vm654, %v618, 0
        %v668 = vsel %vm654, %v619, 0
        %v671 = vsel %vm654, %v620, 0
        %v674 = vsel %vm654, %v621, 0
        %v677 = vsel %vm654, %v622, 0
        %v680 = vsel %vm654, %v631, 0
        %v683 = vsel %vm654, %v632, 0
        %v686 = vsel %vm654, %v633, 0
        %v689 = vsel %vm654, %v634, 0
        %v692 = vsel %vm654, %v635, 0
        %v695 = vsel %vm654, %v636, 0
        %v698 = vsel %vm654, %v637, 0
        %v701 = vsel %vm654, %v638, 0
        %vm703 = vcmask 1041408
        %v705 = vsel %vm703, %v651, 0
        %707 = vmatprep.subr.bf16.mxu0 0
        %708 = vmatpush1.bf16.msra.mxu0 %v649
        %709 = vmatprep.subr.bf16.mxu0 0
        %710 = vmatpush1.bf16.msra.mxu0 %v650
        %711 = vmatprep.subr.bf16.mxu0 0
        %712 = vmatpush1.bf16.msra.mxu0 %v705
        %713 = vmatprep.subr.bf16.mxu0 0
        %714 = vmatpush1.bf16.msra.mxu0 0
        %715 = vmatprep.subr.bf16.mxu0 0
        %716 = vmatpush1.bf16.msra.mxu0 0
        %717 = vmatprep.subr.bf16.mxu0 0
        %718 = vmatpush1.bf16.msra.mxu0 0
        %719 = vmatprep.subr.bf16.mxu0 0
        %720 = vmatpush1.bf16.msra.mxu0 0
        %721 = vmatprep.subr.bf16.mxu0 0
        %722 = vmatpush1.bf16.msra.mxu0 0
        %723 = vmatprep.subr.bf16.mxu0 0
        %724 = vmatpush1.bf16.msra.mxu0 0
        %725 = vmatprep.subr.bf16.mxu0 0
        %726 = vmatpush1.bf16.msra.mxu0 0
        %727 = vmatprep.subr.bf16.mxu0 0
        %728 = vmatpush1.bf16.msra.mxu0 0
        %729 = vmatprep.subr.bf16.mxu0 0
        %730 = vmatpush1.bf16.msra.mxu0 0
        %731 = vmatprep.subr.bf16.mxu0 0
        %732 = vmatpush1.bf16.msra.mxu0 0
        %733 = vmatprep.subr.bf16.mxu0 0
        %734 = vmatpush1.bf16.msra.mxu0 0
        %735 = vmatprep.subr.bf16.mxu0 0
        %736 = vmatpush1.bf16.msra.mxu0 0
        %737 = vmatprep.subr.bf16.mxu0 0
        %738 = vmatpush1.bf16.msra.mxu0 0
        %739 = vmatprep.mubr.bf16.mxu0 0
        %740 = vmatmul.mubr.bf16.gmra.mrb[0].mxu0 %v656
        %v741 = vpop.f32.mrb[0].mxu0
        %v742 = vadd.f32 %v578, %v741
        %v743 = vpop.f32.mrb[0].mxu0
        %v744 = vpop.f32.mrb[0].mxu0
        %v745 = vadd.f32 %v578, %v744
        %v746 = vpop.f32.mrb[0].mxu0
        %747 = vmatprep.mubr.bf16.mxu0 0
        %748 = vmatmul.mubr.bf16.gmra.mrb[0].mxu0 %v659
        %v749 = vpop.f32.mrb[0].mxu0
        %v750 = vadd.f32 %v578, %v749
        %v751 = vpop.f32.mrb[0].mxu0
        %v752 = vpop.f32.mrb[0].mxu0
        %v753 = vadd.f32 %v578, %v752
        %v754 = vpop.f32.mrb[0].mxu0
        %755 = vmatprep.mubr.bf16.mxu0 0
        %756 = vmatmul.mubr.bf16.gmra.mrb[0].mxu0 %v662
        %v757 = vpop.f32.mrb[0].mxu0
        %v758 = vadd.f32 %v578, %v757
        %v759 = vpop.f32.mrb[0].mxu0
        %v760 = vpop.f32.mrb[0].mxu0
        %v761 = vadd.f32 %v578, %v760
        %v762 = vpop.f32.mrb[0].mxu0
        %763 = vmatprep.mubr.bf16.mxu0 0
        %764 = vmatmul.mubr.bf16.gmra.mrb[0].mxu0 %v665
        %v765 = vpop.f32.mrb[0].mxu0
        %v766 = vadd.f32 %v578, %v765
        %v767 = vpop.f32.mrb[0].mxu0
        %v768 = vpop.f32.mrb[0].mxu0
        %v769 = vadd.f32 %v578, %v768
        %v770 = vpop.f32.mrb[0].mxu0
        %771 = vmatprep.mubr.bf16.mxu0 0
        %772 = vmatmul.mubr.bf16.gmra.mrb[0].mxu0 %v668
        %v773 = vpop.f32.mrb[0].mxu0
        %v774 = vadd.f32 %v578, %v773
        %v775 = vpop.f32.mrb[0].mxu0
        %v776 = vpop.f32.mrb[0].mxu0
        %v777 = vadd.f32 %v578, %v776
        %v778 = vpop.f32.mrb[0].mxu0
        %779 = vmatprep.mubr.bf16.mxu0 0
        %780 = vmatmul.mubr.bf16.gmra.mrb[0].mxu0 %v671
        %v781 = vpop.f32.mrb[0].mxu0
        %v782 = vadd.f32 %v578, %v781
        %v783 = vpop.f32.mrb[0].mxu0
        %v784 = vpop.f32.mrb[0].mxu0
        %v785 = vadd.f32 %v578, %v784
        %v786 = vpop.f32.mrb[0].mxu0
        %787 = vmatprep.mubr.bf16.mxu0 0
        %788 = vmatmul.mubr.bf16.gmra.mrb[0].mxu0 %v674
        %v789 = vpop.f32.mrb[0].mxu0
        %v790 = vadd.f32 %v578, %v789
        %v791 = vpop.f32.mrb[0].mxu0
        %v792 = vpop.f32.mrb[0].mxu0
        %v793 = vadd.f32 %v578, %v792
        %v794 = vpop.f32.mrb[0].mxu0
        %795 = vmatprep.mubr.bf16.mxu0 0
        %796 = vmatmul.mubr.bf16.gmra.mrb[0].mxu0 %v677
        %v797 = vpop.f32.mrb[0].mxu0
        %v798 = vadd.f32 %v578, %v797
        %v799 = vpop.f32.mrb[0].mxu0
        %v800 = vpop.f32.mrb[0].mxu0
        %v801 = vadd.f32 %v578, %v800
        %v802 = vpop.f32.mrb[0].mxu0
        %803 = vmatprep.mubr.bf16.mxu0 0
        %804 = vmatmul.mubr.bf16.gmra.mrb[0].mxu0 %v680
        %v805 = vpop.f32.mrb[0].mxu0
        %v806 = vadd.f32 %v578, %v805
        %v807 = vpop.f32.mrb[0].mxu0
        %v808 = vpop.f32.mrb[0].mxu0
        %v809 = vadd.f32 %v578, %v808
        %v810 = vpop.f32.mrb[0].mxu0
        %811 = vmatprep.mubr.bf16.mxu0 0
        %812 = vmatmul.mubr.bf16.gmra.mrb[0].mxu0 %v683
        %v813 = vpop.f32.mrb[0].mxu0
        %v814 = vadd.f32 %v578, %v813
        %v815 = vpop.f32.mrb[0].mxu0
        %v816 = vpop.f32.mrb[0].mxu0
        %v817 = vadd.f32 %v578, %v816
        %v818 = vpop.f32.mrb[0].mxu0
        %819 = vmatprep.mubr.bf16.mxu0 0
        %820 = vmatmul.mubr.bf16.gmra.mrb[0].mxu0 %v686
        %v821 = vpop.f32.mrb[0].mxu0
        %v822 = vadd.f32 %v578, %v821
        %v823 = vpop.f32.mrb[0].mxu0
        %v824 = vpop.f32.mrb[0].mxu0
        %v825 = vadd.f32 %v578, %v824
        %v826 = vpop.f32.mrb[0].mxu0
        %827 = vmatprep.mubr.bf16.mxu0 0
        %828 = vmatmul.mubr.bf16.gmra.mrb[0].mxu0 %v689
        %v829 = vpop.f32.mrb[0].mxu0
        %v830 = vadd.f32 %v578, %v829
        %v831 = vpop.f32.mrb[0].mxu0
        %v832 = vpop.f32.mrb[0].mxu0
        %v833 = vadd.f32 %v578, %v832
        %v834 = vpop.f32.mrb[0].mxu0
        %835 = vmatprep.mubr.bf16.mxu0 0
        %836 = vmatmul.mubr.bf16.gmra.mrb[0].mxu0 %v692
        %v837 = vpop.f32.mrb[0].mxu0
        %v838 = vadd.f32 %v578, %v837
        %v839 = vpop.f32.mrb[0].mxu0
        %v840 = vpop.f32.mrb[0].mxu0
        %v841 = vadd.f32 %v578, %v840
        %v842 = vpop.f32.mrb[0].mxu0
        %843 = vmatprep.mubr.bf16.mxu0 0
        %844 = vmatmul.mubr.bf16.gmra.mrb[0].mxu0 %v695
        %v845 = vpop.f32.mrb[0].mxu0
        %v846 = vadd.f32 %v578, %v845
        %v847 = vpop.f32.mrb[0].mxu0
        %v848 = vpop.f32.mrb[0].mxu0
        %v849 = vadd.f32 %v578, %v848
        %v850 = vpop.f32.mrb[0].mxu0
        %851 = vmatprep.mubr.bf16.mxu0 0
        %852 = vmatmul.mubr.bf16.gmra.mrb[0].mxu0 %v698
        %v853 = vpop.f32.mrb[0].mxu0
        %v854 = vadd.f32 %v578, %v853
        %v855 = vpop.f32.mrb[0].mxu0
        %v856 = vpop.f32.mrb[0].mxu0
        %v857 = vadd.f32 %v578, %v856
        %v858 = vpop.f32.mrb[0].mxu0
        %859 = vmatprep.mubr.bf16.mxu0 0
        %860 = vmatmul.mubr.bf16.gmra.mrb[0].mxu0 %v701
        %v861 = vpop.f32.mrb[0].mxu0
        %v862 = vadd.f32 %v578, %v861
        %v863 = vpop.f32.mrb[0].mxu0
        %v864 = vpop.f32.mrb[0].mxu0
        %v865 = vadd.f32 %v578, %v864
        %v866 = vpop.f32.mrb[0].mxu0
        %867 = vdwg.mxu0
        %v868 = vmax.f32 %v742, 0.0
        %v869 = vmax.f32 %v745, 0.0
        %v870 = vmax.f32 %v750, 0.0
        %v871 = vmax.f32 %v753, 0.0
        %v872 = vmax.f32 %v758, 0.0
        %v873 = vmax.f32 %v761, 0.0
        %v874 = vmax.f32 %v766, 0.0
        %v875 = vmax.f32 %v769, 0.0
        %v876 = vmax.f32 %v774, 0.0
        %v877 = vmax.f32 %v777, 0.0
        %v878 = vmax.f32 %v782, 0.0
        %v879 = vmax.f32 %v785, 0.0
        %v880 = vmax.f32 %v790, 0.0
        %v881 = vmax.f32 %v793, 0.0
        %v882 = vmax.f32 %v798, 0.0
        %v883 = vmax.f32 %v801, 0.0
        %v884 = vmax.f32 %v806, 0.0
        %v885 = vmax.f32 %v809, 0.0
        %v886 = vmax.f32 %v814, 0.0
        %v887 = vmax.f32 %v817, 0.0
        %v888 = vmax.f32 %v822, 0.0
        %v889 = vmax.f32 %v825, 0.0
        %v890 = vmax.f32 %v830, 0.0
        %v891 = vmax.f32 %v833, 0.0
        %v892 = vmax.f32 %v838, 0.0
        %v893 = vmax.f32 %v841, 0.0
        %v894 = vmax.f32 %v846, 0.0
        %v895 = vmax.f32 %v849, 0.0
        %v896 = vmax.f32 %v854, 0.0
        %v897 = vmax.f32 %v857, 0.0
        %v898 = vmax.f32 %v862, 0.0
        %v899 = vmax.f32 %v865, 0.0
        %v900 = vld [vmem:[#allocation6] ss:$2 sm:$0x3]
        %v901 = vld [vmem:[%s269 + $0x4] sm:$0x3f]
        %v903 = vcombine.high %v901, %v901
        %v905 = vunpack.c.l.s4 1983009808
        %v906 = vunpack.c.0.s8 %v905
        %v907 = vlaneseq
        %v908 = vshrl.u32 %v907, 7
        %v909 = vsub.s32 %v906, %v908
        %v910 = vrot.slane %v901, %v909
        %v912 = vunpack.c.l.s4 1983009808
        %v913 = vunpack.c.0.s8 %v912
        %v914 = vlaneseq
        %v915 = vshrl.u32 %v914, 7
        %v916 = vsub.s32 %v913, %v915
        %v917 = vrot.slane %v903, %v916
        %918 = vrot.lane.b32.xlu0 %v910, 111
        %v919 = vpop.permute.xlu0 %918
        %920 = vrot.lane.b32.xlu0 %v917, 111
        %v921 = vpop.permute.xlu0 %920
        %v922 = vrot.slane %v919, 4
        %v923 = vrot.slane %v921, 4
        %v924 = vsel %vm339, %v922, %v923
        %v925 = vsel %vm341, %v919, %v924
        %927 = vst [vmem:[#allocation2] sm:$0x33] %v925
        %v928 = vld [vmem:[%s269 + $0x4] sm:$0x3f]
        %v930 = vcombine.low %v928, %v928
        %v932 = vunpack.c.l.s4 1983009808
        %v933 = vunpack.c.0.s8 %v932
        %v934 = vlaneseq
        %v935 = vshrl.u32 %v934, 7
        %v936 = vsub.s32 %v933, %v935
        %v937 = vrot.slane %v930, %v936
        %v939 = vunpack.c.l.s4 1983009808
        %v940 = vunpack.c.0.s8 %v939
        %v941 = vlaneseq
        %v942 = vshrl.u32 %v941, 7
        %v943 = vsub.s32 %v940, %v942
        %v944 = vrot.slane %v928, %v943
        %945 = vrot.lane.b32.xlu0 %v937, 110
        %v946 = vpop.permute.xlu0 %945
        %947 = vrot.lane.b32.xlu0 %v944, 110
        %v948 = vpop.permute.xlu0 %947
        %v949 = vrot.slane %v946, 4
        %v950 = vrot.slane %v948, 4
        %v951 = vsel %vm339, %v949, %v950
        %v952 = vsel %vm369, %v946, %v951
        %954 = vst [vmem:[#allocation2] sm:$0xcc] %v952
        %v955 = vld [vmem:[%s269 + $0x4] sm:$0x3f]
        %v957 = vcombine.high %v955, %v955
        %v959 = vunpack.c.l.s4 1983009808
        %v960 = vunpack.c.0.s8 %v959
        %v961 = vlaneseq
        %v962 = vshrl.u32 %v961, 7
        %v963 = vsub.s32 %v960, %v962
        %v964 = vrot.slane %v955, %v963
        %v966 = vunpack.c.l.s4 1983009808
        %v967 = vunpack.c.0.s8 %v966
        %v968 = vlaneseq
        %v969 = vshrl.u32 %v968, 7
        %v970 = vsub.s32 %v967, %v969
        %v971 = vrot.slane %v957, %v970
        %972 = vrot.lane.b32.xlu0 %v964, 109
        %v973 = vpop.permute.xlu0 %972
        %974 = vrot.lane.b32.xlu0 %v971, 109
        %v975 = vpop.permute.xlu0 %974
        %v976 = vrot.slane %v973, 4
        %v977 = vrot.slane %v975, 4
        %v978 = vsel %vm339, %v976, %v977
        %v979 = vsel %vm397, %v973, %v978
        %981 = vst [vmem:[#allocation2 + $0x8] sm:$0x33] %v979
        %v982 = vld [vmem:[%s269 + $0x4] sm:$0x3f]
        %v984 = vcombine.low %v982, %v982
        %v986 = vunpack.c.l.s4 1983009808
        %v987 = vunpack.c.0.s8 %v986
        %v988 = vlaneseq
        %v989 = vshrl.u32 %v988, 7
        %v990 = vsub.s32 %v987, %v989
        %v991 = vrot.slane %v984, %v990
        %v993 = vunpack.c.l.s4 1983009808
        %v994 = vunpack.c.0.s8 %v993
        %v995 = vlaneseq
        %v996 = vshrl.u32 %v995, 7
        %v997 = vsub.s32 %v994, %v996
        %v998 = vrot.slane %v982, %v997
        %999 = vrot.lane.b32.xlu0 %v991, 93
        %v1000 = vpop.permute.xlu0 %999
        %1001 = vrot.lane.b32.xlu0 %v998, 93
        %v1002 = vpop.permute.xlu0 %1001
        %v1003 = vrot.slane %v1000, 4
        %v1004 = vrot.slane %v1002, 4
        %v1005 = vsel %vm339, %v1003, %v1004
        %v1006 = vsel %vm425, %v1000, %v1005
        %1008 = vst [vmem:[#allocation2 + $0x8] sm:$0xcc] %v1006
        %v1009 = vld [vmem:[%s269 + $0x4] sm:$0x3f]
        %v1011 = vcombine.high %v1009, %v1009
        %v1013 = vunpack.c.l.s4 1983009808
        %v1014 = vunpack.c.0.s8 %v1013
        %v1015 = vlaneseq
        %v1016 = vshrl.u32 %v1015, 7
        %v1017 = vsub.s32 %v1014, %v1016
        %v1018 = vrot.slane %v1009, %v1017
        %v1020 = vunpack.c.l.s4 1983009808
        %v1021 = vunpack.c.0.s8 %v1020
        %v1022 = vlaneseq
        %v1023 = vshrl.u32 %v1022, 7
        %v1024 = vsub.s32 %v1021, %v1023
        %v1025 = vrot.slane %v1011, %v1024
        %1026 = vrot.lane.b32.xlu0 %v1018, 92
        %v1027 = vpop.permute.xlu0 %1026
        %1028 = vrot.lane.b32.xlu0 %v1025, 92
        %v1029 = vpop.permute.xlu0 %1028
        %v1030 = vrot.slane %v1027, 4
        %v1031 = vrot.slane %v1029, 4
        %v1032 = vsel %vm339, %v1030, %v1031
        %v1033 = vsel %vm453, %v1027, %v1032
        %1035 = vst [vmem:[#allocation2 + $0x10] sm:$0x33] %v1033
        %v1036 = vld [vmem:[%s269 + $0x4] sm:$0x3f]
        %v1038 = vcombine.low %v1036, %v1036
        %v1040 = vunpack.c.l.s4 1983009808
        %v1041 = vunpack.c.0.s8 %v1040
        %v1042 = vlaneseq
        %v1043 = vshrl.u32 %v1042, 7
        %v1044 = vsub.s32 %v1041, %v1043
        %v1045 = vrot.slane %v1038, %v1044
        %v1047 = vunpack.c.l.s4 1983009808
        %v1048 = vunpack.c.0.s8 %v1047
        %v1049 = vlaneseq
        %v1050 = vshrl.u32 %v1049, 7
        %v1051 = vsub.s32 %v1048, %v1050
        %v1052 = vrot.slane %v1036, %v1051
        %1053 = vrot.lane.b32.xlu0 %v1045, 91
        %v1054 = vpop.permute.xlu0 %1053
        %1055 = vrot.lane.b32.xlu0 %v1052, 91
        %v1056 = vpop.permute.xlu0 %1055
        %v1057 = vrot.slane %v1054, 4
        %v1058 = vrot.slane %v1056, 4
        %v1059 = vsel %vm339, %v1057, %v1058
        %v1060 = vsel %vm481, %v1054, %v1059
        %1062 = vst [vmem:[#allocation2 + $0x10] sm:$0xcc] %v1060
        %v1063 = vld [vmem:[%s269 + $0x4] sm:$0x3f]
        %v1065 = vcombine.high %v1063, %v1063
        %v1067 = vunpack.c.l.s4 1983009808
        %v1068 = vunpack.c.0.s8 %v1067
        %v1069 = vlaneseq
        %v1070 = vshrl.u32 %v1069, 7
        %v1071 = vsub.s32 %v1068, %v1070
        %v1072 = vrot.slane %v1063, %v1071
        %v1074 = vunpack.c.l.s4 1983009808
        %v1075 = vunpack.c.0.s8 %v1074
        %v1076 = vlaneseq
        %v1077 = vshrl.u32 %v1076, 7
        %v1078 = vsub.s32 %v1075, %v1077
        %v1079 = vrot.slane %v1065, %v1078
        %1080 = vrot.lane.b32.xlu0 %v1072, 75
        %v1081 = vpop.permute.xlu0 %1080
        %1082 = vrot.lane.b32.xlu0 %v1079, 75
        %v1083 = vpop.permute.xlu0 %1082
        %v1084 = vrot.slane %v1081, 4
        %v1085 = vrot.slane %v1083, 4
        %v1086 = vsel %vm339, %v1084, %v1085
        %v1087 = vsel %vm509, %v1081, %v1086
        %1089 = vst [vmem:[#allocation2 + $0x18] sm:$0x33] %v1087
        %v1090 = vld [vmem:[%s269 + $0x4] sm:$0x3f]
        %v1092 = vcombine.low %v1090, %v1090
        %v1094 = vunpack.c.l.s4 1983009808
        %v1095 = vunpack.c.0.s8 %v1094
        %v1096 = vlaneseq
        %v1097 = vshrl.u32 %v1096, 7
        %v1098 = vsub.s32 %v1095, %v1097
        %v1099 = vrot.slane %v1092, %v1098
        %v1101 = vunpack.c.l.s4 1983009808
        %v1102 = vunpack.c.0.s8 %v1101
        %v1103 = vlaneseq
        %v1104 = vshrl.u32 %v1103, 7
        %v1105 = vsub.s32 %v1102, %v1104
        %v1106 = vrot.slane %v1090, %v1105
        %1107 = vrot.lane.b32.xlu0 %v1099, 74
        %v1108 = vpop.permute.xlu0 %1107
        %1109 = vrot.lane.b32.xlu0 %v1106, 74
        %v1110 = vpop.permute.xlu0 %1109
        %v1111 = vrot.slane %v1108, 4
        %v1112 = vrot.slane %v1110, 4
        %v1113 = vsel %vm339, %v1111, %v1112
        %v1114 = vsel %vm537, %v1108, %v1113
        %1116 = vst [vmem:[#allocation2 + $0x18] sm:$0xcc] %v1114
        %v1117 = vld [vmem:[%s269 + $0x4] sm:$0x3f]
        %v1119 = vcombine.high %v1117, %v1117
        %v1121 = vunpack.c.l.s4 1983009808
        %v1122 = vunpack.c.0.s8 %v1121
        %v1123 = vlaneseq
        %v1124 = vshrl.u32 %v1123, 7
        %v1125 = vsub.s32 %v1122, %v1124
        %v1126 = vrot.slane %v1117, %v1125
        %v1128 = vunpack.c.l.s4 1983009808
        %v1129 = vunpack.c.0.s8 %v1128
        %v1130 = vlaneseq
        %v1131 = vshrl.u32 %v1130, 7
        %v1132 = vsub.s32 %v1129, %v1131
        %v1133 = vrot.slane %v1119, %v1132
        %1134 = vrot.lane.b32.xlu0 %v1126, 73
        %v1135 = vpop.permute.xlu0 %1134
        %1136 = vrot.lane.b32.xlu0 %v1133, 73
        %v1137 = vpop.permute.xlu0 %1136
        %v1138 = vrot.slane %v1135, 4
        %v1139 = vrot.slane %v1137, 4
        %v1140 = vsel %vm339, %v1138, %v1139
        %v1141 = vsel %vm565, %v1135, %v1140
        %1143 = vst [vmem:[#allocation2 + $0x20] sm:$0x33] %v1141
        %v1144 = vld [vmem:[#allocation2] sm:$0xff]
        %v1145 = vld [vmem:[#allocation2 + $0x8] sm:$0xff]
        %v1146 = vld [vmem:[#allocation2 + $0x10] sm:$0xff]
        %v1147 = vld [vmem:[#allocation2 + $0x18] sm:$0xff]
        %v1148 = vld [vmem:[#allocation2 + $0x20] sm:$0x33]
        %v1154 = vunpack.c.l.b16 %v1144
        %v1155 = vunpack.c.h.b16 %v1144
        %v1156 = vunpack.c.l.b16 %v1145
        %v1157 = vunpack.c.h.b16 %v1145
        %v1158 = vunpack.c.l.b16 %v1146
        %v1159 = vunpack.c.h.b16 %v1146
        %v1160 = vunpack.c.l.b16 %v1147
        %v1161 = vunpack.c.h.b16 %v1147
        %v1162 = vunpack.c.l.b16 %v1148
        %v1163 = vunpack.c.h.b16 %v1148
        %v1164 = vpack.c.b16 %v1156, %v1154
        %v1165 = vpack.c.b16 %v1157, %v1155
        %v1166 = vpack.c.b16 %v1160, %v1158
        %v1167 = vpack.c.b16 %v1161, %v1159
        %v1168 = vpack.c.b16 %v1162, %v1162
        %v1169 = vpack.c.b16 %v1163, %v1163
        %1176 = vxpose.xlu0.c.b16.start [1/8] %v1164, 128
        %1177 = vxpose.xlu0.c.b16.cont [2/8] %v1166, 128
        %1178 = vxpose.xlu0.c.b16.cont [3/8] %v1168, 128
        %1179 = vxpose.xlu0.c.b16.cont [4/8] 0, 128
        %1180 = vxpose.xlu0.c.b16.cont [5/8] 0, 128
        %1181 = vxpose.xlu0.c.b16.cont [6/8] 0, 128
        %1182 = vxpose.xlu0.c.b16.cont [7/8] 0, 128
        %1183 = vxpose.xlu0.c.b16.end [8/8] 0, 128
        %v1184 = vpop.trf.xlu0
        %v1185 = vpop.trf.xlu0
        %v1186 = vpop.trf.xlu0
        %v1187 = vpop.trf.xlu0
        %v1188 = vpop.trf.xlu0
        %v1189 = vpop.trf.xlu0
        %v1190 = vpop.trf.xlu0
        %v1191 = vpop.trf.xlu0
        %1192 = vxpose.xlu0.c.b16.start [1/8] %v1165, 128
        %1193 = vxpose.xlu0.c.b16.cont [2/8] %v1167, 128
        %1194 = vxpose.xlu0.c.b16.cont [3/8] %v1169, 128
        %1195 = vxpose.xlu0.c.b16.cont [4/8] 0, 128
        %1196 = vxpose.xlu0.c.b16.cont [5/8] 0, 128
        %1197 = vxpose.xlu0.c.b16.cont [6/8] 0, 128
        %1198 = vxpose.xlu0.c.b16.cont [7/8] 0, 128
        %1199 = vxpose.xlu0.c.b16.end [8/8] 0, 128
        %v1200 = vpop.trf.xlu0
        %v1201 = vpop.trf.xlu0
        %v1202 = vpop.trf.xlu0
        %v1203 = vpop.trf.xlu0
        %v1204 = vpop.trf.xlu0
        %v1205 = vpop.trf.xlu0
        %v1206 = vpop.trf.xlu0
        %v1207 = vpop.trf.xlu0
        %v1209 = vsel %vm654, %v1184, 0
        %v1212 = vsel %vm654, %v1185, 0
        %v1215 = vsel %vm654, %v1186, 0
        %v1218 = vsel %vm654, %v1187, 0
        %v1221 = vsel %vm654, %v1188, 0
        %v1224 = vsel %vm654, %v1189, 0
        %v1227 = vsel %vm654, %v1190, 0
        %v1230 = vsel %vm654, %v1191, 0
        %v1233 = vsel %vm654, %v1200, 0
        %v1236 = vsel %vm654, %v1201, 0
        %v1239 = vsel %vm654, %v1202, 0
        %v1242 = vsel %vm654, %v1203, 0
        %v1245 = vsel %vm654, %v1204, 0
        %v1248 = vsel %vm654, %v1205, 0
        %v1251 = vsel %vm654, %v1206, 0
        %v1254 = vsel %vm654, %v1207, 0
        %1256 = vmatprep.subr.bf16.mxu0 0
        %1257 = vmatpush1.bf16.msra.mxu0 %v649
        %1258 = vmatprep.subr.bf16.mxu0 0
        %1259 = vmatpush1.bf16.msra.mxu0 %v650
        %1260 = vmatprep.subr.bf16.mxu0 0
        %1261 = vmatpush1.bf16.msra.mxu0 %v705
        %1262 = vmatprep.subr.bf16.mxu0 0
        %1263 = vmatpush1.bf16.msra.mxu0 0
        %1264 = vmatprep.subr.bf16.mxu0 0
        %1265 = vmatpush1.bf16.msra.mxu0 0
        %1266 = vmatprep.subr.bf16.mxu0 0
        %1267 = vmatpush1.bf16.msra.mxu0 0
        %1268 = vmatprep.subr.bf16.mxu0 0
        %1269 = vmatpush1.bf16.msra.mxu0 0
        %1270 = vmatprep.subr.bf16.mxu0 0
        %1271 = vmatpush1.bf16.msra.mxu0 0
        %1272 = vmatprep.subr.bf16.mxu0 0
        %1273 = vmatpush1.bf16.msra.mxu0 0
        %1274 = vmatprep.subr.bf16.mxu0 0
        %1275 = vmatpush1.bf16.msra.mxu0 0
        %1276 = vmatprep.subr.bf16.mxu0 0
        %1277 = vmatpush1.bf16.msra.mxu0 0
        %1278 = vmatprep.subr.bf16.mxu0 0
        %1279 = vmatpush1.bf16.msra.mxu0 0
        %1280 = vmatprep.subr.bf16.mxu0 0
        %1281 = vmatpush1.bf16.msra.mxu0 0
        %1282 = vmatprep.subr.bf16.mxu0 0
        %1283 = vmatpush1.bf16.msra.mxu0 0
        %1284 = vmatprep.subr.bf16.mxu0 0
        %1285 = vmatpush1.bf16.msra.mxu0 0
        %1286 = vmatprep.subr.bf16.mxu0 0
        %1287 = vmatpush1.bf16.msra.mxu0 0
        %1288 = vmatprep.mubr.bf16.mxu0 0
        %1289 = vmatmul.mubr.bf16.gmra.mrb[0].mxu0 %v1209
        %v1290 = vpop.f32.mrb[0].mxu0
        %v1291 = vadd.f32 %v578, %v1290
        %v1292 = vpop.f32.mrb[0].mxu0
        %v1293 = vpop.f32.mrb[0].mxu0
        %v1294 = vadd.f32 %v578, %v1293
        %v1295 = vpop.f32.mrb[0].mxu0
        %1296 = vmatprep.mubr.bf16.mxu0 0
        %1297 = vmatmul.mubr.bf16.gmra.mrb[0].mxu0 %v1212
        %v1298 = vpop.f32.mrb[0].mxu0
        %v1299 = vadd.f32 %v578, %v1298
        %v1300 = vpop.f32.mrb[0].mxu0
        %v1301 = vpop.f32.mrb[0].mxu0
        %v1302 = vadd.f32 %v578, %v1301
        %v1303 = vpop.f32.mrb[0].mxu0
        %1304 = vmatprep.mubr.bf16.mxu0 0
        %1305 = vmatmul.mubr.bf16.gmra.mrb[0].mxu0 %v1215
        %v1306 = vpop.f32.mrb[0].mxu0
        %v1307 = vadd.f32 %v578, %v1306
        %v1308 = vpop.f32.mrb[0].mxu0
        %v1309 = vpop.f32.mrb[0].mxu0
        %v1310 = vadd.f32 %v578, %v1309
        %v1311 = vpop.f32.mrb[0].mxu0
        %1312 = vmatprep.mubr.bf16.mxu0 0
        %1313 = vmatmul.mubr.bf16.gmra.mrb[0].mxu0 %v1218
        %v1314 = vpop.f32.mrb[0].mxu0
        %v1315 = vadd.f32 %v578, %v1314
        %v1316 = vpop.f32.mrb[0].mxu0
        %v1317 = vpop.f32.mrb[0].mxu0
        %v1318 = vadd.f32 %v578, %v1317
        %v1319 = vpop.f32.mrb[0].mxu0
        %1320 = vmatprep.mubr.bf16.mxu0 0
        %1321 = vmatmul.mubr.bf16.gmra.mrb[0].mxu0 %v1221
        %v1322 = vpop.f32.mrb[0].mxu0
        %v1323 = vadd.f32 %v578, %v1322
        %v1324 = vpop.f32.mrb[0].mxu0
        %v1325 = vpop.f32.mrb[0].mxu0
        %v1326 = vadd.f32 %v578, %v1325
        %v1327 = vpop.f32.mrb[0].mxu0
        %1328 = vmatprep.mubr.bf16.mxu0 0
        %1329 = vmatmul.mubr.bf16.gmra.mrb[0].mxu0 %v1224
        %v1330 = vpop.f32.mrb[0].mxu0
        %v1331 = vadd.f32 %v578, %v1330
        %v1332 = vpop.f32.mrb[0].mxu0
        %v1333 = vpop.f32.mrb[0].mxu0
        %v1334 = vadd.f32 %v578, %v1333
        %v1335 = vpop.f32.mrb[0].mxu0
        %1336 = vmatprep.mubr.bf16.mxu0 0
        %1337 = vmatmul.mubr.bf16.gmra.mrb[0].mxu0 %v1227
        %v1338 = vpop.f32.mrb[0].mxu0
        %v1339 = vadd.f32 %v578, %v1338
        %v1340 = vpop.f32.mrb[0].mxu0
        %v1341 = vpop.f32.mrb[0].mxu0
        %v1342 = vadd.f32 %v578, %v1341
        %v1343 = vpop.f32.mrb[0].mxu0
        %1344 = vmatprep.mubr.bf16.mxu0 0
        %1345 = vmatmul.mubr.bf16.gmra.mrb[0].mxu0 %v1230
        %v1346 = vpop.f32.mrb[0].mxu0
        %v1347 = vadd.f32 %v578, %v1346
        %v1348 = vpop.f32.mrb[0].mxu0
        %v1349 = vpop.f32.mrb[0].mxu0
        %v1350 = vadd.f32 %v578, %v1349
        %v1351 = vpop.f32.mrb[0].mxu0
        %1352 = vmatprep.mubr.bf16.mxu0 0
        %1353 = vmatmul.mubr.bf16.gmra.mrb[0].mxu0 %v1233
        %v1354 = vpop.f32.mrb[0].mxu0
        %v1355 = vadd.f32 %v578, %v1354
        %v1356 = vpop.f32.mrb[0].mxu0
        %v1357 = vpop.f32.mrb[0].mxu0
        %v1358 = vadd.f32 %v578, %v1357
        %v1359 = vpop.f32.mrb[0].mxu0
        %1360 = vmatprep.mubr.bf16.mxu0 0
        %1361 = vmatmul.mubr.bf16.gmra.mrb[0].mxu0 %v1236
        %v1362 = vpop.f32.mrb[0].mxu0
        %v1363 = vadd.f32 %v578, %v1362
        %v1364 = vpop.f32.mrb[0].mxu0
        %v1365 = vpop.f32.mrb[0].mxu0
        %v1366 = vadd.f32 %v578, %v1365
        %v1367 = vpop.f32.mrb[0].mxu0
        %1368 = vmatprep.mubr.bf16.mxu0 0
        %1369 = vmatmul.mubr.bf16.gmra.mrb[0].mxu0 %v1239
        %v1370 = vpop.f32.mrb[0].mxu0
        %v1371 = vadd.f32 %v578, %v1370
        %v1372 = vpop.f32.mrb[0].mxu0
        %v1373 = vpop.f32.mrb[0].mxu0
        %v1374 = vadd.f32 %v578, %v1373
        %v1375 = vpop.f32.mrb[0].mxu0
        %1376 = vmatprep.mubr.bf16.mxu0 0
        %1377 = vmatmul.mubr.bf16.gmra.mrb[0].mxu0 %v1242
        %v1378 = vpop.f32.mrb[0].mxu0
        %v1379 = vadd.f32 %v578, %v1378
        %v1380 = vpop.f32.mrb[0].mxu0
        %v1381 = vpop.f32.mrb[0].mxu0
        %v1382 = vadd.f32 %v578, %v1381
        %v1383 = vpop.f32.mrb[0].mxu0
        %1384 = vmatprep.mubr.bf16.mxu0 0
        %1385 = vmatmul.mubr.bf16.gmra.mrb[0].mxu0 %v1245
        %v1386 = vpop.f32.mrb[0].mxu0
        %v1387 = vadd.f32 %v578, %v1386
        %v1388 = vpop.f32.mrb[0].mxu0
        %v1389 = vpop.f32.mrb[0].mxu0
        %v1390 = vadd.f32 %v578, %v1389
        %v1391 = vpop.f32.mrb[0].mxu0
        %1392 = vmatprep.mubr.bf16.mxu0 0
        %1393 = vmatmul.mubr.bf16.gmra.mrb[0].mxu0 %v1248
        %v1394 = vpop.f32.mrb[0].mxu0
        %v1395 = vadd.f32 %v578, %v1394
        %v1396 = vpop.f32.mrb[0].mxu0
        %v1397 = vpop.f32.mrb[0].mxu0
        %v1398 = vadd.f32 %v578, %v1397
        %v1399 = vpop.f32.mrb[0].mxu0
        %1400 = vmatprep.mubr.bf16.mxu0 0
        %1401 = vmatmul.mubr.bf16.gmra.mrb[0].mxu0 %v1251
        %v1402 = vpop.f32.mrb[0].mxu0
        %v1403 = vadd.f32 %v578, %v1402
        %v1404 = vpop.f32.mrb[0].mxu0
        %v1405 = vpop.f32.mrb[0].mxu0
        %v1406 = vadd.f32 %v578, %v1405
        %v1407 = vpop.f32.mrb[0].mxu0
        %1408 = vmatprep.mubr.bf16.mxu0 0
        %1409 = vmatmul.mubr.bf16.gmra.mrb[0].mxu0 %v1254
        %v1410 = vpop.f32.mrb[0].mxu0
        %v1411 = vadd.f32 %v578, %v1410
        %v1412 = vpop.f32.mrb[0].mxu0
        %v1413 = vpop.f32.mrb[0].mxu0
        %v1414 = vadd.f32 %v578, %v1413
        %v1415 = vpop.f32.mrb[0].mxu0
        %1416 = vdwg.mxu0
        %v1417 = vmax.f32 %v1291, 0.0
        %v1418 = vmax.f32 %v1294, 0.0
        %v1419 = vmax.f32 %v1299, 0.0
        %v1420 = vmax.f32 %v1302, 0.0
        %v1421 = vmax.f32 %v1307, 0.0
        %v1422 = vmax.f32 %v1310, 0.0
        %v1423 = vmax.f32 %v1315, 0.0
        %v1424 = vmax.f32 %v1318, 0.0
        %v1425 = vmax.f32 %v1323, 0.0
        %v1426 = vmax.f32 %v1326, 0.0
        %v1427 = vmax.f32 %v1331, 0.0
        %v1428 = vmax.f32 %v1334, 0.0
        %v1429 = vmax.f32 %v1339, 0.0
        %v1430 = vmax.f32 %v1342, 0.0
        %v1431 = vmax.f32 %v1347, 0.0
        %v1432 = vmax.f32 %v1350, 0.0
        %v1433 = vmax.f32 %v1355, 0.0
        %v1434 = vmax.f32 %v1358, 0.0
        %v1435 = vmax.f32 %v1363, 0.0
        %v1436 = vmax.f32 %v1366, 0.0
        %v1437 = vmax.f32 %v1371, 0.0
        %v1438 = vmax.f32 %v1374, 0.0
        %v1439 = vmax.f32 %v1379, 0.0
        %v1440 = vmax.f32 %v1382, 0.0
        %v1441 = vmax.f32 %v1387, 0.0
        %v1442 = vmax.f32 %v1390, 0.0
        %v1443 = vmax.f32 %v1395, 0.0
        %v1444 = vmax.f32 %v1398, 0.0
        %v1445 = vmax.f32 %v1403, 0.0
        %v1446 = vmax.f32 %v1406, 0.0
        %v1447 = vmax.f32 %v1411, 0.0
        %v1448 = vmax.f32 %v1414, 0.0
        %s1449 = scalar_lea.vmem [#allocation6], 1
        %v1450 = vld [vmem:[%s1449] ss:$2 sm:$0x3]
        %v1452 = vlaneseq
        %v1453 = vshrl.u32 %v1452, 7
        %v1454 = vsub.s32 0, %v1453
        %v1455 = vrot.slane %v1450, %v1454
        %v1456 = vlaneseq
        %v1457 = vshrl.u32 %v1456, 7
        %v1458 = vsub.s32 1, %v1457
        %v1459 = vrot.slane %v1450, %v1458
        %1462 = vmatprep.subr.mxu0 0.0
        %1463 = vmatpush1.msra.mxu0 %v1417
        %1464 = vmatprep.subr.mxu0 0.0
        %1465 = vmatpush1.msra.mxu0 %v1418
        %1466 = vmatprep.subr.mxu0 0.0
        %1467 = vmatpush1.msra.mxu0 %v1419
        %1468 = vmatprep.subr.mxu0 0.0
        %1469 = vmatpush1.msra.mxu0 %v1420
        %1470 = vmatprep.subr.mxu0 0.0
        %1471 = vmatpush1.msra.mxu0 %v1421
        %1472 = vmatprep.subr.mxu0 0.0
        %1473 = vmatpush1.msra.mxu0 %v1422
        %1474 = vmatprep.subr.mxu0 0.0
        %1475 = vmatpush1.msra.mxu0 %v1423
        %1476 = vmatprep.subr.mxu0 0.0
        %1477 = vmatpush1.msra.mxu0 %v1424
        %1478 = vmatprep.subr.mxu0 0.0
        %1479 = vmatpush1.msra.mxu0 %v1425
        %1480 = vmatprep.subr.mxu0 0.0
        %1481 = vmatpush1.msra.mxu0 %v1426
        %1482 = vmatprep.subr.mxu0 0.0
        %1483 = vmatpush1.msra.mxu0 %v1427
        %1484 = vmatprep.subr.mxu0 0.0
        %1485 = vmatpush1.msra.mxu0 %v1428
        %1486 = vmatprep.subr.mxu0 0.0
        %1487 = vmatpush1.msra.mxu0 %v1429
        %1488 = vmatprep.subr.mxu0 0.0
        %1489 = vmatpush1.msra.mxu0 %v1430
        %1490 = vmatprep.subr.mxu0 0.0
        %1491 = vmatpush1.msra.mxu0 %v1431
        %1492 = vmatprep.subr.mxu0 0.0
        %1493 = vmatpush1.msra.mxu0 %v1432
        %1494 = vmatprep.subr.mxu0 0.0
        %1495 = vmatpush1.msra.mxu0 %v1433
        %1496 = vmatprep.subr.mxu0 0.0
        %1497 = vmatpush1.msra.mxu0 %v1434
        %1498 = vmatprep.subr.mxu0 0.0
        %1499 = vmatpush1.msra.mxu0 %v1435
        %1500 = vmatprep.subr.mxu0 0.0
        %1501 = vmatpush1.msra.mxu0 %v1436
        %1502 = vmatprep.subr.mxu0 0.0
        %1503 = vmatpush1.msra.mxu0 %v1437
        %1504 = vmatprep.subr.mxu0 0.0
        %1505 = vmatpush1.msra.mxu0 %v1438
        %1506 = vmatprep.subr.mxu0 0.0
        %1507 = vmatpush1.msra.mxu0 %v1439
        %1508 = vmatprep.subr.mxu0 0.0
        %1509 = vmatpush1.msra.mxu0 %v1440
        %1510 = vmatprep.subr.mxu0 0.0
        %1511 = vmatpush1.msra.mxu0 %v1441
        %1512 = vmatprep.subr.mxu0 0.0
        %1513 = vmatpush1.msra.mxu0 %v1442
        %1514 = vmatprep.subr.mxu0 0.0
        %1515 = vmatpush1.msra.mxu0 %v1443
        %1516 = vmatprep.subr.mxu0 0.0
        %1517 = vmatpush1.msra.mxu0 %v1444
        %1518 = vmatprep.subr.mxu0 0.0
        %1519 = vmatpush1.msra.mxu0 %v1445
        %1520 = vmatprep.subr.mxu0 0.0
        %1521 = vmatpush1.msra.mxu0 %v1446
        %1522 = vmatprep.subr.mxu0 0.0
        %1523 = vmatpush1.msra.mxu0 %v1447
        %1524 = vmatprep.subr.mxu0 0.0
        %1525 = vmatpush1.msra.mxu0 %v1448
        %1526 = vmatprep.mubr.f32.mxu0 %v1459
        %1527 = vmatmul.mubr.f32.gmra.mrb[0].mxu0 %v1455
        %v1528 = vpop.f32.mrb[0].mxu0
        %v1529 = vadd.f32 0.0, %v1528
        %v1530 = vpop.f32.mrb[0].mxu0
        %1531 = vdwg.mxu0
        %v1533 = vlaneseq
        %v1534 = vshrl.u32 %v1533, 7
        %v1535 = vsub.s32 0, %v1534
        %v1536 = vrot.slane %v900, %v1535
        %v1537 = vlaneseq
        %v1538 = vshrl.u32 %v1537, 7
        %v1539 = vsub.s32 1, %v1538
        %v1540 = vrot.slane %v900, %v1539
        %1543 = vmatprep.subr.mxu0 0.0
        %1544 = vmatpush1.msra.mxu0 %v868
        %1545 = vmatprep.subr.mxu0 0.0
        %1546 = vmatpush1.msra.mxu0 %v869
        %1547 = vmatprep.subr.mxu0 0.0
        %1548 = vmatpush1.msra.mxu0 %v870
        %1549 = vmatprep.subr.mxu0 0.0
        %1550 = vmatpush1.msra.mxu0 %v871
        %1551 = vmatprep.subr.mxu0 0.0
        %1552 = vmatpush1.msra.mxu0 %v872
        %1553 = vmatprep.subr.mxu0 0.0
        %1554 = vmatpush1.msra.mxu0 %v873
        %1555 = vmatprep.subr.mxu0 0.0
        %1556 = vmatpush1.msra.mxu0 %v874
        %1557 = vmatprep.subr.mxu0 0.0
        %1558 = vmatpush1.msra.mxu0 %v875
        %1559 = vmatprep.subr.mxu0 0.0
        %1560 = vmatpush1.msra.mxu0 %v876
        %1561 = vmatprep.subr.mxu0 0.0
        %1562 = vmatpush1.msra.mxu0 %v877
        %1563 = vmatprep.subr.mxu0 0.0
        %1564 = vmatpush1.msra.mxu0 %v878
        %1565 = vmatprep.subr.mxu0 0.0
        %1566 = vmatpush1.msra.mxu0 %v879
        %1567 = vmatprep.subr.mxu0 0.0
        %1568 = vmatpush1.msra.mxu0 %v880
        %1569 = vmatprep.subr.mxu0 0.0
        %1570 = vmatpush1.msra.mxu0 %v881
        %1571 = vmatprep.subr.mxu0 0.0
        %1572 = vmatpush1.msra.mxu0 %v882
        %1573 = vmatprep.subr.mxu0 0.0
        %1574 = vmatpush1.msra.mxu0 %v883
        %1575 = vmatprep.subr.mxu0 0.0
        %1576 = vmatpush1.msra.mxu0 %v884
        %1577 = vmatprep.subr.mxu0 0.0
        %1578 = vmatpush1.msra.mxu0 %v885
        %1579 = vmatprep.subr.mxu0 0.0
        %1580 = vmatpush1.msra.mxu0 %v886
        %1581 = vmatprep.subr.mxu0 0.0
        %1582 = vmatpush1.msra.mxu0 %v887
        %1583 = vmatprep.subr.mxu0 0.0
        %1584 = vmatpush1.msra.mxu0 %v888
        %1585 = vmatprep.subr.mxu0 0.0
        %1586 = vmatpush1.msra.mxu0 %v889
        %1587 = vmatprep.subr.mxu0 0.0
        %1588 = vmatpush1.msra.mxu0 %v890
        %1589 = vmatprep.subr.mxu0 0.0
        %1590 = vmatpush1.msra.mxu0 %v891
        %1591 = vmatprep.subr.mxu0 0.0
        %1592 = vmatpush1.msra.mxu0 %v892
        %1593 = vmatprep.subr.mxu0 0.0
        %1594 = vmatpush1.msra.mxu0 %v893
        %1595 = vmatprep.subr.mxu0 0.0
        %1596 = vmatpush1.msra.mxu0 %v894
        %1597 = vmatprep.subr.mxu0 0.0
        %1598 = vmatpush1.msra.mxu0 %v895
        %1599 = vmatprep.subr.mxu0 0.0
        %1600 = vmatpush1.msra.mxu0 %v896
        %1601 = vmatprep.subr.mxu0 0.0
        %1602 = vmatpush1.msra.mxu0 %v897
        %1603 = vmatprep.subr.mxu0 0.0
        %1604 = vmatpush1.msra.mxu0 %v898
        %1605 = vmatprep.subr.mxu0 0.0
        %1606 = vmatpush1.msra.mxu0 %v899
        %1607 = vmatprep.mubr.f32.mxu0 %v1540
        %1608 = vmatmul.mubr.f32.gmra.mrb[0].mxu0 %v1536
        %v1609 = vpop.f32.mrb[0].mxu0
        %v1610 = vadd.f32 %v1529, %v1609
        %v1611 = vpop.f32.mrb[0].mxu0
        %1612 = vdwg.mxu0
        %v1613 = vmul.f32 %v1610, 0.00390625
        %v1614 = vpack.c.bf16 %v1613, %v1613
        %v1615 = vld [vmem:[#allocation9] sm:$0xf]
        %v1616 = vld [vmem:[#allocation9 + $0x4] sm:$0xf]
        %v1617 = vld [vmem:[#allocation9 + $0x8] sm:$0xf]
        %v1618 = vld [vmem:[#allocation9 + $0xc] sm:$0xf]
        %v1619 = vld [vmem:[#allocation9 + $0x10] sm:$0xf]
        %v1620 = vld [vmem:[#allocation9 + $0x14] sm:$0xf]
        %v1621 = vld [vmem:[#allocation9 + $0x18] sm:$0xf]
        %v1622 = vld [vmem:[#allocation9 + $0x1c] sm:$0xf]
        %v1623 = vld [vmem:[#allocation9 + $0x20] sm:$0xf]
        %v1624 = vld [vmem:[#allocation9 + $0x24] sm:$0xf]
        %v1625 = vld [vmem:[#allocation9 + $0x28] sm:$0xf]
        %v1626 = vld [vmem:[#allocation9 + $0x2c] sm:$0xf]
        %v1627 = vld [vmem:[#allocation9 + $0x30] sm:$0xf]
        %v1628 = vld [vmem:[#allocation9 + $0x34] sm:$0xf]
        %v1629 = vld [vmem:[#allocation9 + $0x38] sm:$0xf]
        %v1630 = vld [vmem:[#allocation9 + $0x3c] sm:$0xf]
        %v1631 = vld [vmem:[%s5] sm:$0x1]
        %v1648 = vunpack.c.l.b16 %v1615
        %v1649 = vunpack.c.l.b16 %v1616
        %v1650 = vunpack.c.l.b16 %v1617
        %v1651 = vunpack.c.l.b16 %v1618
        %v1652 = vunpack.c.l.b16 %v1619
        %v1653 = vunpack.c.l.b16 %v1620
        %v1654 = vunpack.c.l.b16 %v1621
        %v1655 = vunpack.c.l.b16 %v1622
        %v1656 = vunpack.c.l.b16 %v1623
        %v1657 = vunpack.c.l.b16 %v1624
        %v1658 = vunpack.c.l.b16 %v1625
        %v1659 = vunpack.c.l.b16 %v1626
        %v1660 = vunpack.c.l.b16 %v1627
        %v1661 = vunpack.c.l.b16 %v1628
        %v1662 = vunpack.c.l.b16 %v1629
        %v1663 = vunpack.c.l.b16 %v1630
        %v1664 = vpack.c.b16 %v1649, %v1648
        %v1665 = vpack.c.b16 %v1651, %v1650
        %v1666 = vpack.c.b16 %v1653, %v1652
        %v1667 = vpack.c.b16 %v1655, %v1654
        %v1668 = vpack.c.b16 %v1657, %v1656
        %v1669 = vpack.c.b16 %v1659, %v1658
        %v1670 = vpack.c.b16 %v1661, %v1660
        %v1671 = vpack.c.b16 %v1663, %v1662
        %1680 = vmatprep.subr.bf16.mxu0 0
        %1681 = vmatpush1.bf16.msra.mxu0 %v1664
        %1682 = vmatprep.subr.bf16.mxu0 0
        %1683 = vmatpush1.bf16.msra.mxu0 %v1665
        %1684 = vmatprep.subr.bf16.mxu0 0
        %1685 = vmatpush1.bf16.msra.mxu0 %v1666
        %1686 = vmatprep.subr.bf16.mxu0 0
        %1687 = vmatpush1.bf16.msra.mxu0 %v1667
        %1688 = vmatprep.subr.bf16.mxu0 0
        %1689 = vmatpush1.bf16.msra.mxu0 %v1668
        %1690 = vmatprep.subr.bf16.mxu0 0
        %1691 = vmatpush1.bf16.msra.mxu0 %v1669
        %1692 = vmatprep.subr.bf16.mxu0 0
        %1693 = vmatpush1.bf16.msra.mxu0 %v1670
        %1694 = vmatprep.subr.bf16.mxu0 0
        %1695 = vmatpush1.bf16.msra.mxu0 %v1671
        %1696 = vmatprep.subr.bf16.mxu0 0
        %1697 = vmatpush1.bf16.msra.mxu0 0
        %1698 = vmatprep.subr.bf16.mxu0 0
        %1699 = vmatpush1.bf16.msra.mxu0 0
        %1700 = vmatprep.subr.bf16.mxu0 0
        %1701 = vmatpush1.bf16.msra.mxu0 0
        %1702 = vmatprep.subr.bf16.mxu0 0
        %1703 = vmatpush1.bf16.msra.mxu0 0
        %1704 = vmatprep.subr.bf16.mxu0 0
        %1705 = vmatpush1.bf16.msra.mxu0 0
        %1706 = vmatprep.subr.bf16.mxu0 0
        %1707 = vmatpush1.bf16.msra.mxu0 0
        %1708 = vmatprep.subr.bf16.mxu0 0
        %1709 = vmatpush1.bf16.msra.mxu0 0
        %1710 = vmatprep.subr.bf16.mxu0 0
        %1711 = vmatpush1.bf16.msra.mxu0 0
        %1712 = vmatprep.mubr.bf16.mxu0 0
        %1713 = vmatmul.mubr.bf16.gmra.mrb[0].mxu0 %v1614
        %v1714 = vpop.f32.mrb[0].mxu0
        %v1715 = vadd.f32 %v1631, %v1714
        %v1716 = vpop.f32.mrb[0].mxu0
        %v1717 = vpop.f32.mrb[0].mxu0
        %v1718 = vpop.f32.mrb[0].mxu0
        %1719 = vdwg.mxu0
        %1720 = vst [vmem:[%s308] sm:$0x1] %v1715
        %s1721 = sand.u32 %s164, 1
        %s1722 = scalar_lea.sflag [#allocation5], %s1721
        %s1723 = sand.u32 %s164, 1
        %s1724 = scalar_lea.vmem [#allocation11], %s1723
        // Predicated region
        $region61: #{tpu_custom_call.1} parent=43 // pred_check
          %p1725 = pneg %p174
        $region62: #{tpu_custom_call.1} parent=43 // pred_check_branch
          %1727 = sbr.rel (%p1725) target = $region64
        $region63: #{tpu_custom_call.1} parent=43 // pred_region
          %s1729 = ssub.s32 16, 16
          %1730 = vsyncadd %s1722, %s1729
          %s1731 = smul.addr %s25, 16
          %s1732 = scalar_lea.hbm %s6, %s1731
          %s1734 = sshll.u32 %s1724, 4
          %s1735 = int_to_ptr.vmem [resolvable:$true] %s1734
          %1737 = dma.vmem_to_hbm [thread:$0]  %s1735, 16, %s1732, %s1722
        $region64: #{tpu_custom_call.1} parent=43 // pred_fallthru
          _
      $region44: #{tpu_custom_call.1} parent=5 // pred_fallthru
        _
      %p1738 = scmp.le.s32.totalorder 2, %s20
      // Predicated region
      $region65: #{tpu_custom_call.1} parent=5 // pred_check
        %p1739 = pneg %p1738
      $region66: #{tpu_custom_call.1} parent=5 // pred_check_branch
        %1741 = sbr.rel (%p1739) target = $region68
      $region67: #{tpu_custom_call.1} parent=5 // pred_region
        %s1742 = ssub.s32 %s20, 2
        // Predicated region
        $region69: #{tpu_custom_call.1} parent=67 // pred_check
          %p1743 = pneg %p180
        $region70: #{tpu_custom_call.1} parent=67 // pred_check_branch
          %1745 = sbr.rel (%p1743) target = $region72
        $region71: #{tpu_custom_call.1} parent=67 // pred_region
          %s1746 = sand.u32 %s165, 1
          %s1747 = scalar_lea.sflag [#allocation5], %s1746
          %s1748 = sand.u32 %s165, 1
          %s1749 = scalar_lea.vmem [#allocation11], %s1748
          %1750 = dma.done %s1747, 16
        $region72: #{tpu_custom_call.1} parent=67 // pred_fallthru
          _
      $region68: #{tpu_custom_call.1} parent=5 // pred_fallthru
        _
    $region6: #{tpu_custom_call.1} parent=1 // loop_footer
      %s24 = sadd.s32 1, %s20
    $region7: #{tpu_custom_call.1} parent=1 // loop_footer_branch
      %19 = sbr.rel target = $region3
    $region8: #{tpu_custom_call.1} parent=1 // loop_exit
      _
    %1751 = vsyncpa [#allocation4], 1
    %s1752 = scalar_lea.sflag [#allocation4], 1
    %1753 = vsyncpa %s1752, 1
    %1754 = vsyncpa [#allocation7], 1
    %1755 = vsyncpa [#allocation10], 1
    %1756 = vsyncpa [#allocation5], 1
    %s1757 = scalar_lea.sflag [#allocation5], 1
    %1758 = vsyncpa %s1757, 1

</llo_original>
